<compile_context>
chip_gen: v6e
topology: v6e:2x2x1
jax: 0.10.0
libtpu: 0.0.40
codegen_flags: <defaults>
</compile_context>

<pallas_src>
import functools

import jax
import jax.numpy as jnp
from jax import lax
from jax.experimental import pallas as pl
from jax.experimental.pallas import tpu as pltpu


def _round_up(x, m):
    return (x + m - 1) // m * m


# ------------------------------ fused kernel --------------------------------


def _block_kernel(x_ref, w1_ref, s1_ref, b1_ref, wd_ref, s2_ref, b2_ref,
                  w3_ref, s3_ref, b3_ref, o_ref, hp_ref,
                  *, stride, H, W, Ho, Wo, oup, use_res):
    Hp, Wp = H + 2, W + 2
    M = H * W
    Mo = Ho * Wo
    hidp = w1_ref.shape[1]

    # Input block is already lane-dense (Cin, H*W): no in-kernel relayout.
    x_cm = x_ref[0]                                            # (Cin, M) f32

    # ---- stage 1: 1x1 expand (bf16 MXU, f32 accumulate) + BN + ReLU6 --------
    h = lax.dot_general(x_cm.astype(jnp.bfloat16), w1_ref[...],
                        dimension_numbers=(((0,), (0,)), ((), ())),
                        preferred_element_type=jnp.float32)    # (M, hidp) f32
    h = jnp.clip(h * s1_ref[...] + b1_ref[...], 0.0, 6.0)

    # ---- stage 2: 3x3 depthwise, pad=1 (VPU, f32 math) ----------------------
    # Zero only the 1-wide halo border each step; the interior is fully
    # overwritten below.  Unconditional (not program_id==0) so it remains
    # correct when the batch grid axis is split across TensorCores.
    hp_ref[0:1, :, :] = jnp.zeros((1, Wp, hidp), jnp.float32)
    hp_ref[H + 1:H + 2, :, :] = jnp.zeros((1, Wp, hidp), jnp.float32)
    hp_ref[:, 0:1, :] = jnp.zeros((Hp, 1, hidp), jnp.float32)
    hp_ref[:, W + 1:W + 2, :] = jnp.zeros((Hp, 1, hidp), jnp.float32)
    hp_ref[1:H + 1, 1:W + 1, :] = h.reshape(H, W, hidp)

    hp = hp_ref[...]            # load the plane ONCE; taps slice the value
    wd = wd_ref[...]            # (3, 3, hidp)
    acc = hp[0:H, 0:W, :] * wd[0:1, 0:1, :]     # init with first tap product
    for kh in range(3):
        for kw in range(3):
            if kh == 0 and kw == 0:
                continue
            acc = acc + hp[kh:kh + H, kw:kw + W, :] * wd[kh:kh + 1, kw:kw + 1, :]

    y = jnp.clip(acc.reshape(M, hidp) * s2_ref[...] + b2_ref[...], 0.0, 6.0)
    y = y.astype(jnp.bfloat16)                                  # (M, hidp)

    if stride == 2:
        # Stride-2 output == stride-1 output subsampled at (2i, 2j).  The
        # subsample is a one-hot selection matmul on the MXU: no strided
        # loads and no parity-reshape relayout of the halo plane; exact in
        # bf16 because each row has a single 1.0.
        r = lax.broadcasted_iota(jnp.int32, (Mo, M), 0)
        c = lax.broadcasted_iota(jnp.int32, (Mo, M), 1)
        tgt = (r // Wo) * (2 * W) + (r % Wo) * 2
        sel = jnp.where(c == tgt, 1.0, 0.0).astype(jnp.bfloat16)
        y = lax.dot_general(sel, y,
                            dimension_numbers=(((1,), (0,)), ((), ())),
                            preferred_element_type=jnp.float32)
        y = y.astype(jnp.bfloat16)              # exact: one-hot row picks

    # ---- stage 3: 1x1 project (bf16 MXU, f32 acc) + BN (+ residual) ---------
    z = lax.dot_general(w3_ref[...], y,
                        dimension_numbers=(((0,), (1,)), ((), ())),
                        preferred_element_type=jnp.float32)     # (oupp, Mo)
    z = (z * s3_ref[...] + b3_ref[...])[:oup, :]
    if use_res:
        z = z + x_cm                            # Cin == oup, Mo == M
    o_ref[0] = z.astype(o_ref.dtype)            # lane-dense (oup, Ho*Wo) store


# ------------------------------ module wrapper -------------------------------


@functools.partial(jax.jit, static_argnums=(2, 3, 4))
def inverted_residual(x_nchw, params, stride, inp, oup):
    assert stride in (1, 2)
    N, Cin, H, W = x_nchw.shape
    assert Cin == inp
    hid = params["w1"].shape[1]
    use_res = (stride == 1) and (inp == oup)
    if stride == 1:
        Ho, Wo = H, W
    else:
        assert H % 2 == 0 and W % 2 == 0, "stride=2 path assumes even H, W"
        Ho, Wo = H // 2, W // 2
    M, Mo = H * W, Ho * Wo
    hidp = _round_up(hid, 128)        # full 128-lane channel tiles
    oupp = _round_up(oup, 8)          # full sublanes for the projection rows

    def pad_last(a, t):
        return jnp.pad(a, [(0, 0)] * (a.ndim - 1) + [(0, t - a.shape[-1])])

    # Zero-padded / pre-cast parameters.  Padded channels stay exactly zero
    # through every stage because their folded BN scale/bias are zero too.
    w1 = pad_last(params["w1"], hidp).astype(jnp.bfloat16)        # (Cin, hidp)
    s1 = pad_last(params["s1"], hidp)                             # (1, hidp)
    b1 = pad_last(params["b1"], hidp)
    wd = pad_last(params["wd"], hidp)                             # (3, 3, hidp)
    s2 = pad_last(params["s2"], hidp)
    b2 = pad_last(params["b2"], hidp)
    w3 = jnp.pad(params["w3"],
                 ((0, hidp - hid), (0, oupp - oup))).astype(jnp.bfloat16)
    s3 = pad_last(params["s3"], oupp).reshape(oupp, 1)
    b3 = pad_last(params["b3"], oupp).reshape(oupp, 1)

    x_flat = x_nchw.reshape(N, Cin, M).astype(jnp.float32)        # lane-dense

    kernel = functools.partial(_block_kernel, stride=stride, H=H, W=W,
                               Ho=Ho, Wo=Wo, oup=oup, use_res=use_res)

    flops = 2 * N * (Cin * hidp * M + 9 * M * hidp + hidp * oupp * Mo)
    if stride == 2:
        flops += 2 * N * Mo * M * hidp
    bytes_accessed = (4 * (N * Cin * M + N * oup * Mo)
                      + 2 * (w1.size + w3.size)
                      + 4 * (wd.size + s1.size + b1.size + s2.size + b2.size
                             + s3.size + b3.size))

    out = pl.pallas_call(
        kernel,
        grid=(N,),
        in_specs=[
            pl.BlockSpec((1, Cin, M), lambda n: (n, 0, 0)),
            pl.BlockSpec((Cin, hidp), lambda n: (0, 0)),
            pl.BlockSpec((1, hidp), lambda n: (0, 0)),
            pl.BlockSpec((1, hidp), lambda n: (0, 0)),
            pl.BlockSpec((3, 3, hidp), lambda n: (0, 0, 0)),
            pl.BlockSpec((1, hidp), lambda n: (0, 0)),
            pl.BlockSpec((1, hidp), lambda n: (0, 0)),
            pl.BlockSpec((hidp, oupp), lambda n: (0, 0)),
            pl.BlockSpec((oupp, 1), lambda n: (0, 0)),
            pl.BlockSpec((oupp, 1), lambda n: (0, 0)),
        ],
        out_specs=pl.BlockSpec((1, oup, Mo), lambda n: (n, 0, 0)),
        out_shape=jax.ShapeDtypeStruct((N, oup, Mo), jnp.float32),
        scratch_shapes=[pltpu.VMEM((H + 2, W + 2, hidp), jnp.float32)],
        compiler_params=pltpu.CompilerParams(
            dimension_semantics=("parallel",),
            vmem_limit_bytes=32 * 1024 * 1024),
        cost_estimate=pl.CostEstimate(flops=flops, transcendentals=0,
                                      bytes_accessed=bytes_accessed),
    )(x_flat, w1, s1, b1, wd, s2, b2, w3, s3, b3)

    return out.reshape(N, oup, Ho, Wo)


# --------------------------------- params -----------------------------------


def init_params(key, inp, oup, expand_ratio):
    hid = inp * expand_ratio
    ks = jax.random.split(key, 15)

    def bn(kg, kb, km, kv, c):
        gamma = 1.0 + 0.1 * jax.random.normal(kg, (c,), jnp.float32)
        beta = 0.1 * jax.random.normal(kb, (c,), jnp.float32)
        mean = 0.1 * jax.random.normal(km, (c,), jnp.float32)
        var = jnp.abs(jax.random.normal(kv, (c,), jnp.float32)) * 0.5 + 0.5
        eps = 1e-5
        scale = gamma / jnp.sqrt(var + eps)
        bias = beta - mean * scale
        return scale.reshape(1, c), bias.reshape(1, c)

    w1 = 0.2 * jax.random.normal(ks[0], (inp, hid), jnp.float32)
    s1, b1 = bn(ks[1], ks[2], ks[3], ks[4], hid)
    wd = 0.2 * jax.random.normal(ks[5], (3, 3, hid), jnp.float32)
    s2, b2 = bn(ks[6], ks[7], ks[8], ks[9], hid)
    w3 = 0.2 * jax.random.normal(ks[10], (hid, oup), jnp.float32)
    s3, b3 = bn(ks[11], ks[12], ks[13], ks[14], oup)
    return dict(w1=w1, s1=s1, b1=b1, wd=wd, s2=s2, b2=b2, w3=w3, s3=s3, b3=b3)


# ------------------------------ pure-JAX ref ---------------------------------


def ref_forward(x_nchw, p, stride, inp, oup):
    use_res = (stride == 1) and (inp == oup)
    x = jnp.transpose(x_nchw, (0, 2, 3, 1)).astype(jnp.float32)
    h = jnp.einsum("nhwc,cd->nhwd", x, p["w1"], precision=lax.Precision.HIGHEST)
    h = jnp.clip(h * p["s1"][0] + p["b1"][0], 0.0, 6.0)
    dw = p["wd"].reshape(3, 3, 1, -1)
    h = lax.conv_general_dilated(
        h, dw, window_strides=(stride, stride), padding=((1, 1), (1, 1)),
        dimension_numbers=("NHWC", "HWIO", "NHWC"),
        feature_group_count=dw.shape[-1], precision=lax.Precision.HIGHEST)
    h = jnp.clip(h * p["s2"][0] + p["b2"][0], 0.0, 6.0)
    y = jnp.einsum("nhwc,cd->nhwd", h, p["w3"], precision=lax.Precision.HIGHEST)
    y = y * p["s3"][0] + p["b3"][0]
    if use_res:
        y = y + x
    return jnp.transpose(y, (0, 3, 1, 2))


# ----------------------------------- main ------------------------------------


if __name__ == "__main__":
    key = jax.random.PRNGKey(0)
    kx, kp1, kp2 = jax.random.split(key, 3)

    # The kernel uses bf16 MXU operands (f32 accumulation) for the two 1x1
    # convs, so the tolerance vs. the f32 Precision.HIGHEST reference is 5e-2.
    TOL = 5e-2

    # config 1: stride=1, inp == oup -> residual path exercised
    inp, oup, stride, expand = 4, 4, 1, 6
    x = jax.random.normal(kx, (2, inp, 16, 16), jnp.float32)
    p = init_params(kp1, inp, oup, expand)
    out = jax.block_until_ready(inverted_residual(x, p, stride, inp, oup))
    ref = ref_forward(x, p, stride, inp, oup)
    assert out.shape == (2, oup, 16, 16)
    assert jnp.allclose(out, ref, rtol=TOL, atol=TOL), \
        float(jnp.max(jnp.abs(out - ref)))

    # config 2: stride=2, inp != oup -> no residual, stride-2 depthwise
    inp2, oup2, stride2, expand2 = 4, 8, 2, 6
    x2 = jax.random.normal(kx, (2, inp2, 16, 16), jnp.float32)
    p2 = init_params(kp2, inp2, oup2, expand2)
    out2 = jax.block_until_ready(inverted_residual(x2, p2, stride2, inp2, oup2))
    ref2 = ref_forward(x2, p2, stride2, inp2, oup2)
    assert out2.shape == (2, oup2, 8, 8)
    assert jnp.allclose(out2, ref2, rtol=TOL, atol=TOL), \
        float(jnp.max(jnp.abs(out2 - ref2)))

    print("KERNEL_OK")
</pallas_src>

<mosaic_0001>
module attributes {stable_mosaic.version = 11 : i64} {
  func.func @_block_kernel(%arg0: i32, %arg1: memref<1x4x256xf32, #tpu.memory_space<vmem>>, %arg2: memref<4x128xbf16, #tpu.memory_space<vmem>>, %arg3: memref<1x128xf32, #tpu.memory_space<vmem>>, %arg4: memref<1x128xf32, #tpu.memory_space<vmem>>, %arg5: memref<3x3x128xf32, #tpu.memory_space<vmem>>, %arg6: memref<1x128xf32, #tpu.memory_space<vmem>>, %arg7: memref<1x128xf32, #tpu.memory_space<vmem>>, %arg8: memref<128x8xbf16, #tpu.memory_space<vmem>>, %arg9: memref<8x1xf32, #tpu.memory_space<vmem>>, %arg10: memref<8x1xf32, #tpu.memory_space<vmem>>, %arg11: memref<1x4x256xf32, #tpu.memory_space<vmem>>, %arg12: memref<18x18x128xf32, #tpu.memory_space<vmem>>) attributes {dimension_semantics = [#tpu.dimension_semantics<parallel>], iteration_bounds = array<i64: 2>, scalar_prefetch = 0 : i64, scratch_operands = 1 : i64, tpu.core_type = #tpu.core_type<tc>, window_params = [{transform_indices = @transform_0, window_bounds = array<i64: 1, 4, 256>}, {pipeline_mode = #tpu.pipeline_mode<synchronous>, transform_indices = @transform_1, window_bounds = array<i64: 4, 128>}, {pipeline_mode = #tpu.pipeline_mode<synchronous>, transform_indices = @transform_2, window_bounds = array<i64: 1, 128>}, {pipeline_mode = #tpu.pipeline_mode<synchronous>, transform_indices = @transform_3, window_bounds = array<i64: 1, 128>}, {pipeline_mode = #tpu.pipeline_mode<synchronous>, transform_indices = @transform_4, window_bounds = array<i64: 3, 3, 128>}, {pipeline_mode = #tpu.pipeline_mode<synchronous>, transform_indices = @transform_5, window_bounds = array<i64: 1, 128>}, {pipeline_mode = #tpu.pipeline_mode<synchronous>, transform_indices = @transform_6, window_bounds = array<i64: 1, 128>}, {pipeline_mode = #tpu.pipeline_mode<synchronous>, transform_indices = @transform_7, window_bounds = array<i64: 128, 8>}, {pipeline_mode = #tpu.pipeline_mode<synchronous>, transform_indices = @transform_8, window_bounds = array<i64: 8, 1>}, {pipeline_mode = #tpu.pipeline_mode<synchronous>, transform_indices = @transform_9, window_bounds = array<i64: 8, 1>}, {transform_indices = @transform_10, window_bounds = array<i64: 1, 4, 256>}]} {
    %c0 = arith.constant 0 : index
    %c0_0 = arith.constant 0 : index
    %c0_1 = arith.constant 0 : index
    %0 = vector.load %arg1[%c0, %c0_0, %c0_1] : memref<1x4x256xf32, #tpu.memory_space<vmem>>, vector<1x4x256xf32>
    %1 = vector.shape_cast %0 : vector<1x4x256xf32> to vector<4x256xf32>
    %2 = arith.truncf %1 : vector<4x256xf32> to vector<4x256xbf16>
    %c0_2 = arith.constant 0 : index
    %c0_3 = arith.constant 0 : index
    %3 = vector.load %arg2[%c0_2, %c0_3] : memref<4x128xbf16, #tpu.memory_space<vmem>>, vector<4x128xbf16>
    %cst = arith.constant dense<0.000000e+00> : vector<256x128xf32>
    %4 = tpu.matmul %2, %3, %cst {dimension_numbers = #tpu.dot_dimension_numbers<[0], [0], [1], [1], [0, 1, 1, 1], [], []>} : vector<4x256xbf16>, vector<4x128xbf16>, vector<256x128xf32> -> vector<256x128xf32>
    %c0_4 = arith.constant 0 : index
    %c0_5 = arith.constant 0 : index
    %5 = vector.load %arg3[%c0_4, %c0_5] : memref<1x128xf32, #tpu.memory_space<vmem>>, vector<1x128xf32>
    %6 = vector.broadcast %5 : vector<1x128xf32> to vector<256x128xf32>
    %7 = arith.mulf %4, %6 : vector<256x128xf32>
    %c0_6 = arith.constant 0 : index
    %c0_7 = arith.constant 0 : index
    %8 = vector.load %arg4[%c0_6, %c0_7] : memref<1x128xf32, #tpu.memory_space<vmem>>, vector<1x128xf32>
    %9 = vector.broadcast %8 : vector<1x128xf32> to vector<256x128xf32>
    %10 = arith.addf %7, %9 : vector<256x128xf32>
    %cst_8 = arith.constant 0.000000e+00 : f32
    %cst_9 = arith.constant 6.000000e+00 : f32
    %11 = vector.broadcast %cst_8 : f32 to vector<256x128xf32>
    %12 = arith.maximumf %11, %10 : vector<256x128xf32>
    %13 = vector.broadcast %cst_9 : f32 to vector<256x128xf32>
    %14 = arith.minimumf %13, %12 : vector<256x128xf32>
    %cst_10 = arith.constant 0.000000e+00 : f32
    %15 = vector.broadcast %cst_10 : f32 to vector<1x18x128xf32>
    %c0_11 = arith.constant 0 : index
    %c0_12 = arith.constant 0 : index
    %c0_13 = arith.constant 0 : index
    %16 = vector.load %arg12[%c0_11, %c0_12, %c0_13] : memref<18x18x128xf32, #tpu.memory_space<vmem>>, vector<1x18x128xf32>
    tpu.vector_store %arg12[%c0_11, %c0_12, %c0_13], %15 {strides = array<i32>} : memref<18x18x128xf32, #tpu.memory_space<vmem>>, vector<1x18x128xf32>,
    %cst_14 = arith.constant 0.000000e+00 : f32
    %17 = vector.broadcast %cst_14 : f32 to vector<1x18x128xf32>
    %c17 = arith.constant 17 : index
    %c0_15 = arith.constant 0 : index
    %c0_16 = arith.constant 0 : index
    %18 = vector.load %arg12[%c17, %c0_15, %c0_16] : memref<18x18x128xf32, #tpu.memory_space<vmem>>, vector<1x18x128xf32>
    tpu.vector_store %arg12[%c17, %c0_15, %c0_16], %17 {strides = array<i32>} : memref<18x18x128xf32, #tpu.memory_space<vmem>>, vector<1x18x128xf32>,
    %cst_17 = arith.constant 0.000000e+00 : f32
    %19 = vector.broadcast %cst_17 : f32 to vector<18x1x128xf32>
    %c0_18 = arith.constant 0 : index
    %c0_19 = arith.constant 0 : index
    %c0_20 = arith.constant 0 : index
    %20 = vector.load %arg12[%c0_18, %c0_19, %c0_20] : memref<18x18x128xf32, #tpu.memory_space<vmem>>, vector<18x1x128xf32>
    tpu.vector_store %arg12[%c0_18, %c0_19, %c0_20], %19 {strides = array<i32>} : memref<18x18x128xf32, #tpu.memory_space<vmem>>, vector<18x1x128xf32>,
    %cst_21 = arith.constant 0.000000e+00 : f32
    %21 = vector.broadcast %cst_21 : f32 to vector<18x1x128xf32>
    %c0_22 = arith.constant 0 : index
    %c17_23 = arith.constant 17 : index
    %c0_24 = arith.constant 0 : index
    %22 = vector.load %arg12[%c0_22, %c17_23, %c0_24] : memref<18x18x128xf32, #tpu.memory_space<vmem>>, vector<18x1x128xf32>
    tpu.vector_store %arg12[%c0_22, %c17_23, %c0_24], %21 {strides = array<i32>} : memref<18x18x128xf32, #tpu.memory_space<vmem>>, vector<18x1x128xf32>,
    %23 = vector.shape_cast %14 : vector<256x128xf32> to vector<16x16x128xf32>
    %c1 = arith.constant 1 : index
    %c1_25 = arith.constant 1 : index
    %c0_26 = arith.constant 0 : index
    %24 = vector.load %arg12[%c1, %c1_25, %c0_26] : memref<18x18x128xf32, #tpu.memory_space<vmem>>, vector<16x16x128xf32>
    tpu.vector_store %arg12[%c1, %c1_25, %c0_26], %23 {strides = array<i32>} : memref<18x18x128xf32, #tpu.memory_space<vmem>>, vector<16x16x128xf32>,
    %c0_27 = arith.constant 0 : index
    %c0_28 = arith.constant 0 : index
    %c0_29 = arith.constant 0 : index
    %25 = vector.load %arg12[%c0_27, %c0_28, %c0_29] : memref<18x18x128xf32, #tpu.memory_space<vmem>>, vector<18x18x128xf32>
    %c0_30 = arith.constant 0 : index
    %c0_31 = arith.constant 0 : index
    %c0_32 = arith.constant 0 : index
    %26 = vector.load %arg5[%c0_30, %c0_31, %c0_32] : memref<3x3x128xf32, #tpu.memory_space<vmem>>, vector<3x3x128xf32>
    %27 = vector.extract_strided_slice %25 {offsets = [0, 0, 0], sizes = [16, 16, 128], strides = [1, 1, 1]} : vector<18x18x128xf32> to vector<16x16x128xf32>
    %28 = vector.extract_strided_slice %26 {offsets = [0, 0, 0], sizes = [1, 1, 128], strides = [1, 1, 1]} : vector<3x3x128xf32> to vector<1x1x128xf32>
    %29 = vector.broadcast %28 : vector<1x1x128xf32> to vector<16x16x128xf32>
    %30 = arith.mulf %27, %29 : vector<16x16x128xf32>
    %31 = vector.extract_strided_slice %25 {offsets = [0, 1, 0], sizes = [16, 16, 128], strides = [1, 1, 1]} : vector<18x18x128xf32> to vector<16x16x128xf32>
    %32 = vector.extract_strided_slice %26 {offsets = [0, 1, 0], sizes = [1, 1, 128], strides = [1, 1, 1]} : vector<3x3x128xf32> to vector<1x1x128xf32>
    %33 = vector.broadcast %32 : vector<1x1x128xf32> to vector<16x16x128xf32>
    %34 = arith.mulf %31, %33 : vector<16x16x128xf32>
    %35 = arith.addf %30, %34 : vector<16x16x128xf32>
    %36 = vector.extract_strided_slice %25 {offsets = [0, 2, 0], sizes = [16, 16, 128], strides = [1, 1, 1]} : vector<18x18x128xf32> to vector<16x16x128xf32>
    %37 = vector.extract_strided_slice %26 {offsets = [0, 2, 0], sizes = [1, 1, 128], strides = [1, 1, 1]} : vector<3x3x128xf32> to vector<1x1x128xf32>
    %38 = vector.broadcast %37 : vector<1x1x128xf32> to vector<16x16x128xf32>
    %39 = arith.mulf %36, %38 : vector<16x16x128xf32>
    %40 = arith.addf %35, %39 : vector<16x16x128xf32>
    %41 = vector.extract_strided_slice %25 {offsets = [1, 0, 0], sizes = [16, 16, 128], strides = [1, 1, 1]} : vector<18x18x128xf32> to vector<16x16x128xf32>
    %42 = vector.extract_strided_slice %26 {offsets = [1, 0, 0], sizes = [1, 1, 128], strides = [1, 1, 1]} : vector<3x3x128xf32> to vector<1x1x128xf32>
    %43 = vector.broadcast %42 : vector<1x1x128xf32> to vector<16x16x128xf32>
    %44 = arith.mulf %41, %43 : vector<16x16x128xf32>
    %45 = arith.addf %40, %44 : vector<16x16x128xf32>
    %46 = vector.extract_strided_slice %25 {offsets = [1, 1, 0], sizes = [16, 16, 128], strides = [1, 1, 1]} : vector<18x18x128xf32> to vector<16x16x128xf32>
    %47 = vector.extract_strided_slice %26 {offsets = [1, 1, 0], sizes = [1, 1, 128], strides = [1, 1, 1]} : vector<3x3x128xf32> to vector<1x1x128xf32>
    %48 = vector.broadcast %47 : vector<1x1x128xf32> to vector<16x16x128xf32>
    %49 = arith.mulf %46, %48 : vector<16x16x128xf32>
    %50 = arith.addf %45, %49 : vector<16x16x128xf32>
    %51 = vector.extract_strided_slice %25 {offsets = [1, 2, 0], sizes = [16, 16, 128], strides = [1, 1, 1]} : vector<18x18x128xf32> to vector<16x16x128xf32>
    %52 = vector.extract_strided_slice %26 {offsets = [1, 2, 0], sizes = [1, 1, 128], strides = [1, 1, 1]} : vector<3x3x128xf32> to vector<1x1x128xf32>
    %53 = vector.broadcast %52 : vector<1x1x128xf32> to vector<16x16x128xf32>
    %54 = arith.mulf %51, %53 : vector<16x16x128xf32>
    %55 = arith.addf %50, %54 : vector<16x16x128xf32>
    %56 = vector.extract_strided_slice %25 {offsets = [2, 0, 0], sizes = [16, 16, 128], strides = [1, 1, 1]} : vector<18x18x128xf32> to vector<16x16x128xf32>
    %57 = vector.extract_strided_slice %26 {offsets = [2, 0, 0], sizes = [1, 1, 128], strides = [1, 1, 1]} : vector<3x3x128xf32> to vector<1x1x128xf32>
    %58 = vector.broadcast %57 : vector<1x1x128xf32> to vector<16x16x128xf32>
    %59 = arith.mulf %56, %58 : vector<16x16x128xf32>
    %60 = arith.addf %55, %59 : vector<16x16x128xf32>
    %61 = vector.extract_strided_slice %25 {offsets = [2, 1, 0], sizes = [16, 16, 128], strides = [1, 1, 1]} : vector<18x18x128xf32> to vector<16x16x128xf32>
    %62 = vector.extract_strided_slice %26 {offsets = [2, 1, 0], sizes = [1, 1, 128], strides = [1, 1, 1]} : vector<3x3x128xf32> to vector<1x1x128xf32>
    %63 = vector.broadcast %62 : vector<1x1x128xf32> to vector<16x16x128xf32>
    %64 = arith.mulf %61, %63 : vector<16x16x128xf32>
    %65 = arith.addf %60, %64 : vector<16x16x128xf32>
    %66 = vector.extract_strided_slice %25 {offsets = [2, 2, 0], sizes = [16, 16, 128], strides = [1, 1, 1]} : vector<18x18x128xf32> to vector<16x16x128xf32>
    %67 = vector.extract_strided_slice %26 {offsets = [2, 2, 0], sizes = [1, 1, 128], strides = [1, 1, 1]} : vector<3x3x128xf32> to vector<1x1x128xf32>
    %68 = vector.broadcast %67 : vector<1x1x128xf32> to vector<16x16x128xf32>
    %69 = arith.mulf %66, %68 : vector<16x16x128xf32>
    %70 = arith.addf %65, %69 : vector<16x16x128xf32>
    %71 = vector.shape_cast %70 : vector<16x16x128xf32> to vector<256x128xf32>
    %c0_33 = arith.constant 0 : index
    %c0_34 = arith.constant 0 : index
    %72 = vector.load %arg6[%c0_33, %c0_34] : memref<1x128xf32, #tpu.memory_space<vmem>>, vector<1x128xf32>
    %73 = vector.broadcast %72 : vector<1x128xf32> to vector<256x128xf32>
    %74 = arith.mulf %71, %73 : vector<256x128xf32>
    %c0_35 = arith.constant 0 : index
    %c0_36 = arith.constant 0 : index
    %75 = vector.load %arg7[%c0_35, %c0_36] : memref<1x128xf32, #tpu.memory_space<vmem>>, vector<1x128xf32>
    %76 = vector.broadcast %75 : vector<1x128xf32> to vector<256x128xf32>
    %77 = arith.addf %74, %76 : vector<256x128xf32>
    %cst_37 = arith.constant 0.000000e+00 : f32
    %cst_38 = arith.constant 6.000000e+00 : f32
    %78 = vector.broadcast %cst_37 : f32 to vector<256x128xf32>
    %79 = arith.maximumf %78, %77 : vector<256x128xf32>
    %80 = vector.broadcast %cst_38 : f32 to vector<256x128xf32>
    %81 = arith.minimumf %80, %79 : vector<256x128xf32>
    %82 = arith.truncf %81 : vector<256x128xf32> to vector<256x128xbf16>
    %c0_39 = arith.constant 0 : index
    %c0_40 = arith.constant 0 : index
    %83 = vector.load %arg8[%c0_39, %c0_40] : memref<128x8xbf16, #tpu.memory_space<vmem>>, vector<128x8xbf16>
    %cst_41 = arith.constant dense<0.000000e+00> : vector<8x256xf32>
    %84 = tpu.matmul %83, %82, %cst_41 {dimension_numbers = #tpu.dot_dimension_numbers<[0], [1], [1], [0], [0, 1, 1, 0], [], []>} : vector<128x8xbf16>, vector<256x128xbf16>, vector<8x256xf32> -> vector<8x256xf32>
    %c0_42 = arith.constant 0 : index
    %c0_43 = arith.constant 0 : index
    %85 = vector.load %arg9[%c0_42, %c0_43] : memref<8x1xf32, #tpu.memory_space<vmem>>, vector<8x1xf32>
    %86 = vector.broadcast %85 : vector<8x1xf32> to vector<8x256xf32>
    %87 = arith.mulf %84, %86 : vector<8x256xf32>
    %c0_44 = arith.constant 0 : index
    %c0_45 = arith.constant 0 : index
    %88 = vector.load %arg10[%c0_44, %c0_45] : memref<8x1xf32, #tpu.memory_space<vmem>>, vector<8x1xf32>
    %89 = vector.broadcast %88 : vector<8x1xf32> to vector<8x256xf32>
    %90 = arith.addf %87, %89 : vector<8x256xf32>
    %91 = vector.extract_strided_slice %90 {offsets = [0, 0], sizes = [4, 256], strides = [1, 1]} : vector<8x256xf32> to vector<4x256xf32>
    %92 = arith.addf %91, %1 : vector<4x256xf32>
    %c0_46 = arith.constant 0 : index
    %c0_47 = arith.constant 0 : index
    %c0_48 = arith.constant 0 : index
    %93 = vector.load %arg11[%c0_46, %c0_47, %c0_48] : memref<1x4x256xf32, #tpu.memory_space<vmem>>, vector<1x4x256xf32>
    %94 = vector.shape_cast %93 : vector<1x4x256xf32> to vector<4x256xf32>
    %95 = vector.shape_cast %92 : vector<4x256xf32> to vector<1x4x256xf32>
    tpu.vector_store %arg11[%c0_46, %c0_47, %c0_48], %95 {strides = array<i32>} : memref<1x4x256xf32, #tpu.memory_space<vmem>>, vector<1x4x256xf32>,
    return
  }
  func.func @transform_0(%arg0: i32) -> (i32, i32, i32) {
    %c0_i32 = arith.constant 0 : i32
    %c0_i32_0 = arith.constant 0 : i32
    %c0_i32_1 = arith.constant 0 : i32
    return %arg0, %c0_i32, %c0_i32_0 : i32, i32, i32
  }
  func.func @transform_1(%arg0: i32) -> (i32, i32) {
    %c0_i32 = arith.constant 0 : i32
    %c0_i32_0 = arith.constant 0 : i32
    %c0_i32_1 = arith.constant 0 : i32
    return %c0_i32, %c0_i32_0 : i32, i32
  }
  func.func @transform_2(%arg0: i32) -> (i32, i32) {
    %c0_i32 = arith.constant 0 : i32
    %c0_i32_0 = arith.constant 0 : i32
    %c0_i32_1 = arith.constant 0 : i32
    return %c0_i32, %c0_i32_0 : i32, i32
  }
  func.func @transform_3(%arg0: i32) -> (i32, i32) {
    %c0_i32 = arith.constant 0 : i32
    %c0_i32_0 = arith.constant 0 : i32
    %c0_i32_1 = arith.constant 0 : i32
    return %c0_i32, %c0_i32_0 : i32, i32
  }
  func.func @transform_4(%arg0: i32) -> (i32, i32, i32) {
    %c0_i32 = arith.constant 0 : i32
    %c0_i32_0 = arith.constant 0 : i32
    %c0_i32_1 = arith.constant 0 : i32
    %c0_i32_2 = arith.constant 0 : i32
    return %c0_i32, %c0_i32_0, %c0_i32_1 : i32, i32, i32
  }
  func.func @transform_5(%arg0: i32) -> (i32, i32) {
    %c0_i32 = arith.constant 0 : i32
    %c0_i32_0 = arith.constant 0 : i32
    %c0_i32_1 = arith.constant 0 : i32
    return %c0_i32, %c0_i32_0 : i32, i32
  }
  func.func @transform_6(%arg0: i32) -> (i32, i32) {
    %c0_i32 = arith.constant 0 : i32
    %c0_i32_0 = arith.constant 0 : i32
    %c0_i32_1 = arith.constant 0 : i32
    return %c0_i32, %c0_i32_0 : i32, i32
  }
  func.func @transform_7(%arg0: i32) -> (i32, i32) {
    %c0_i32 = arith.constant 0 : i32
    %c0_i32_0 = arith.constant 0 : i32
    %c0_i32_1 = arith.constant 0 : i32
    return %c0_i32, %c0_i32_0 : i32, i32
  }
  func.func @transform_8(%arg0: i32) -> (i32, i32) {
    %c0_i32 = arith.constant 0 : i32
    %c0_i32_0 = arith.constant 0 : i32
    %c0_i32_1 = arith.constant 0 : i32
    return %c0_i32, %c0_i32_0 : i32, i32
  }
  func.func @transform_9(%arg0: i32) -> (i32, i32) {
    %c0_i32 = arith.constant 0 : i32
    %c0_i32_0 = arith.constant 0 : i32
    %c0_i32_1 = arith.constant 0 : i32
    return %c0_i32, %c0_i32_0 : i32, i32
  }
  func.func @transform_10(%arg0: i32) -> (i32, i32, i32) {
    %c0_i32 = arith.constant 0 : i32
    %c0_i32_0 = arith.constant 0 : i32
    %c0_i32_1 = arith.constant 0 : i32
    return %arg0, %c0_i32, %c0_i32_0 : i32, i32, i32
  }
}

</mosaic_0001>

<llo_original>
// kernel: inverted_residual.1
$region0: #{inverted_residual.1}
  #allocation0 [shape = 'u32[]', space=smem, size = 0x4, offset = 0x4, fixed_abs, tag = 'smem constant byte address 0x4 - core index']
  #allocation1 [shape = 'u32[144,128]{1,0:T(1,128)}', space=vmem, size = 0x12000, scoped, tag = 'internal scratch']
  #allocation2 [shape = 'f32[18,18,128]{2,1,0:T(8,128)}', space=vmem, size = 0x36000, scoped, tag = 'scratch operand']
  %s0 = inlined_call_operand.vmem [shape: f32[2,4,256], index: 0, kind: input, shape index: {}]
  %s1 = inlined_call_operand.vmem [shape: bf16[4,128], index: 1, kind: input, shape index: {}]
  %s2 = inlined_call_operand.vmem [shape: f32[1,128], index: 2, kind: input, shape index: {}]
  %s3 = inlined_call_operand.vmem [shape: f32[1,128], index: 3, kind: input, shape index: {}]
  %s4 = inlined_call_operand.vmem [shape: f32[3,3,128], index: 4, kind: input, shape index: {}]
  %s5 = inlined_call_operand.vmem [shape: f32[1,128], index: 5, kind: input, shape index: {}]
  %s6 = inlined_call_operand.vmem [shape: f32[1,128], index: 6, kind: input, shape index: {}]
  %s7 = inlined_call_operand.vmem [shape: bf16[128,8], index: 7, kind: input, shape index: {}]
  %s8 = inlined_call_operand.vmem [shape: f32[8,1], index: 8, kind: input, shape index: {}]
  %s9 = inlined_call_operand.vmem [shape: f32[8,1], index: 9, kind: input, shape index: {}]
  %s10 = inlined_call_operand.vmem [shape: f32[2,4,256], index: 10, kind: output, shape index: {}]
  %s11 = sld [smem:[#allocation0]]
  $region73: #{inverted_residual.1} parent=0
    _
  %s13 = ssub.s32 1, %s11
  %s14 = scalar_select 0, %s13, %s11
  loop: start=0, step=1, limit=4
  $region2: #{inverted_residual.1} parent=0 // loop_pre_header
    _
  $region3: #{inverted_residual.1} parent=0 // loop_header
    %s16 = sphi 0, %s20
    %p17 = scmp.ge.s32.totalorder %s16, 4
    %s26 = sphi 0, %s28
    %s29 = sphi 0, %s26
    %s30 = sphi 0, %s29
    %s46 = sphi 0, %s30
    %s50 = sphi 0, %s50
    %s52 = sphi 0, %s50
    %s53 = sphi 0, %s52
    %s67 = sphi 0, %s53
    %s71 = sphi 0, %s71
    %s73 = sphi 0, %s71
    %s74 = sphi 0, %s73
    %s88 = sphi 0, %s74
    %s92 = sphi 0, %s92
    %s94 = sphi 0, %s92
    %s95 = sphi 0, %s94
    %s109 = sphi 0, %s95
    %s113 = sphi 0, %s113
    %s115 = sphi 0, %s113
    %s116 = sphi 0, %s115
    %s130 = sphi 0, %s116
    %s134 = sphi 0, %s134
    %s136 = sphi 0, %s134
    %s137 = sphi 0, %s136
    %s151 = sphi 0, %s137
    %s155 = sphi 0, %s155
    %s157 = sphi 0, %s155
    %s158 = sphi 0, %s157
    %s172 = sphi 0, %s158
    %s176 = sphi 0, %s176
    %s178 = sphi 0, %s176
    %s179 = sphi 0, %s178
    %s193 = sphi 0, %s179
    %s197 = sphi 0, %s197
    %s199 = sphi 0, %s197
    %s200 = sphi 0, %s199
    %s214 = sphi 0, %s200
    %s218 = sphi 0, %s218
    %s220 = sphi 0, %s218
    %s221 = sphi 0, %s220
    %s235 = sphi 0, %s221
    %s241 = sphi 0, %s243
    %s244 = sphi 0, %s241
    %s245 = sphi 0, %s244
    %s261 = sphi 0, %s245
  $region4: #{inverted_residual.1} parent=0 // loop_header_branch
    %19 = sbr.rel (%p17) target = $region8
  $region5: #{inverted_residual.1} parent=0 // loop_body
    %s21 = ssub.s32 %s16, 1
    %s22 = ssub.s32 %s16, 2
    %s23 = sadd.s32 %s16, 1
    %s24 = ssub.s32 %s16, %s23
    %p25 = scmp.eq.s32.totalorder %s24, 0
    %s27 = sadd.s32 %s26, 1
    %s28 = scalar_select %p25, %s26, %s27
    %p31 = pneg %p25
    %p32 = scmp.eq.s32.totalorder %s16, 1
    %p33 = por %p31, %p32
    %p34 = scmp.ne.s32.totalorder %s26, %s29
    %p35 = scmp.eq.s32.totalorder %s16, 0
    %p36 = por %p34, %p35
    %p37 = scmp.ne.s32.totalorder %s26, %s29
    %p38 = scmp.eq.s32.totalorder %s21, 1
    %p39 = por %p37, %p38
    %p40 = scmp.ne.s32.totalorder %s29, %s30
    %p41 = scmp.eq.s32.totalorder %s21, 0
    %p42 = por %p40, %p41
    %p43 = scmp.ne.s32.totalorder %s29, %s30
    %p44 = scmp.eq.s32.totalorder %s22, 1
    %p45 = por %p43, %p44
    %p47 = scmp.ne.s32.totalorder %s30, %s46
    %p48 = scmp.eq.s32.totalorder %s22, 0
    %p49 = por %p47, %p48
    %s51 = sadd.s32 %s50, 1
    %p54 = scmp.eq.s32.totalorder %s16, 1
    %p55 = scmp.ne.s32.totalorder %s50, %s52
    %p56 = scmp.eq.s32.totalorder %s16, 0
    %p57 = por %p55, %p56
    %p58 = scmp.ne.s32.totalorder %s50, %s52
    %p59 = scmp.eq.s32.totalorder %s21, 1
    %p60 = por %p58, %p59
    %p61 = scmp.ne.s32.totalorder %s52, %s53
    %p62 = scmp.eq.s32.totalorder %s21, 0
    %p63 = por %p61, %p62
    %p64 = scmp.ne.s32.totalorder %s52, %s53
    %p65 = scmp.eq.s32.totalorder %s22, 1
    %p66 = por %p64, %p65
    %p68 = scmp.ne.s32.totalorder %s53, %s67
    %p69 = scmp.eq.s32.totalorder %s22, 0
    %p70 = por %p68, %p69
    %s72 = sadd.s32 %s71, 1
    %p75 = scmp.eq.s32.totalorder %s16, 1
    %p76 = scmp.ne.s32.totalorder %s71, %s73
    %p77 = scmp.eq.s32.totalorder %s16, 0
    %p78 = por %p76, %p77
    %p79 = scmp.ne.s32.totalorder %s71, %s73
    %p80 = scmp.eq.s32.totalorder %s21, 1
    %p81 = por %p79, %p80
    %p82 = scmp.ne.s32.totalorder %s73, %s74
    %p83 = scmp.eq.s32.totalorder %s21, 0
    %p84 = por %p82, %p83
    %p85 = scmp.ne.s32.totalorder %s73, %s74
    %p86 = scmp.eq.s32.totalorder %s22, 1
    %p87 = por %p85, %p86
    %p89 = scmp.ne.s32.totalorder %s74, %s88
    %p90 = scmp.eq.s32.totalorder %s22, 0
    %p91 = por %p89, %p90
    %s93 = sadd.s32 %s92, 1
    %p96 = scmp.eq.s32.totalorder %s16, 1
    %p97 = scmp.ne.s32.totalorder %s92, %s94
    %p98 = scmp.eq.s32.totalorder %s16, 0
    %p99 = por %p97, %p98
    %p100 = scmp.ne.s32.totalorder %s92, %s94
    %p101 = scmp.eq.s32.totalorder %s21, 1
    %p102 = por %p100, %p101
    %p103 = scmp.ne.s32.totalorder %s94, %s95
    %p104 = scmp.eq.s32.totalorder %s21, 0
    %p105 = por %p103, %p104
    %p106 = scmp.ne.s32.totalorder %s94, %s95
    %p107 = scmp.eq.s32.totalorder %s22, 1
    %p108 = por %p106, %p107
    %p110 = scmp.ne.s32.totalorder %s95, %s109
    %p111 = scmp.eq.s32.totalorder %s22, 0
    %p112 = por %p110, %p111
    %s114 = sadd.s32 %s113, 1
    %p117 = scmp.eq.s32.totalorder %s16, 1
    %p118 = scmp.ne.s32.totalorder %s113, %s115
    %p119 = scmp.eq.s32.totalorder %s16, 0
    %p120 = por %p118, %p119
    %p121 = scmp.ne.s32.totalorder %s113, %s115
    %p122 = scmp.eq.s32.totalorder %s21, 1
    %p123 = por %p121, %p122
    %p124 = scmp.ne.s32.totalorder %s115, %s116
    %p125 = scmp.eq.s32.totalorder %s21, 0
    %p126 = por %p124, %p125
    %p127 = scmp.ne.s32.totalorder %s115, %s116
    %p128 = scmp.eq.s32.totalorder %s22, 1
    %p129 = por %p127, %p128
    %p131 = scmp.ne.s32.totalorder %s116, %s130
    %p132 = scmp.eq.s32.totalorder %s22, 0
    %p133 = por %p131, %p132
    %s135 = sadd.s32 %s134, 1
    %p138 = scmp.eq.s32.totalorder %s16, 1
    %p139 = scmp.ne.s32.totalorder %s134, %s136
    %p140 = scmp.eq.s32.totalorder %s16, 0
    %p141 = por %p139, %p140
    %p142 = scmp.ne.s32.totalorder %s134, %s136
    %p143 = scmp.eq.s32.totalorder %s21, 1
    %p144 = por %p142, %p143
    %p145 = scmp.ne.s32.totalorder %s136, %s137
    %p146 = scmp.eq.s32.totalorder %s21, 0
    %p147 = por %p145, %p146
    %p148 = scmp.ne.s32.totalorder %s136, %s137
    %p149 = scmp.eq.s32.totalorder %s22, 1
    %p150 = por %p148, %p149
    %p152 = scmp.ne.s32.totalorder %s137, %s151
    %p153 = scmp.eq.s32.totalorder %s22, 0
    %p154 = por %p152, %p153
    %s156 = sadd.s32 %s155, 1
    %p159 = scmp.eq.s32.totalorder %s16, 1
    %p160 = scmp.ne.s32.totalorder %s155, %s157
    %p161 = scmp.eq.s32.totalorder %s16, 0
    %p162 = por %p160, %p161
    %p163 = scmp.ne.s32.totalorder %s155, %s157
    %p164 = scmp.eq.s32.totalorder %s21, 1
    %p165 = por %p163, %p164
    %p166 = scmp.ne.s32.totalorder %s157, %s158
    %p167 = scmp.eq.s32.totalorder %s21, 0
    %p168 = por %p166, %p167
    %p169 = scmp.ne.s32.totalorder %s157, %s158
    %p170 = scmp.eq.s32.totalorder %s22, 1
    %p171 = por %p169, %p170
    %p173 = scmp.ne.s32.totalorder %s158, %s172
    %p174 = scmp.eq.s32.totalorder %s22, 0
    %p175 = por %p173, %p174
    %s177 = sadd.s32 %s176, 1
    %p180 = scmp.eq.s32.totalorder %s16, 1
    %p181 = scmp.ne.s32.totalorder %s176, %s178
    %p182 = scmp.eq.s32.totalorder %s16, 0
    %p183 = por %p181, %p182
    %p184 = scmp.ne.s32.totalorder %s176, %s178
    %p185 = scmp.eq.s32.totalorder %s21, 1
    %p186 = por %p184, %p185
    %p187 = scmp.ne.s32.totalorder %s178, %s179
    %p188 = scmp.eq.s32.totalorder %s21, 0
    %p189 = por %p187, %p188
    %p190 = scmp.ne.s32.totalorder %s178, %s179
    %p191 = scmp.eq.s32.totalorder %s22, 1
    %p192 = por %p190, %p191
    %p194 = scmp.ne.s32.totalorder %s179, %s193
    %p195 = scmp.eq.s32.totalorder %s22, 0
    %p196 = por %p194, %p195
    %s198 = sadd.s32 %s197, 1
    %p201 = scmp.eq.s32.totalorder %s16, 1
    %p202 = scmp.ne.s32.totalorder %s197, %s199
    %p203 = scmp.eq.s32.totalorder %s16, 0
    %p204 = por %p202, %p203
    %p205 = scmp.ne.s32.totalorder %s197, %s199
    %p206 = scmp.eq.s32.totalorder %s21, 1
    %p207 = por %p205, %p206
    %p208 = scmp.ne.s32.totalorder %s199, %s200
    %p209 = scmp.eq.s32.totalorder %s21, 0
    %p210 = por %p208, %p209
    %p211 = scmp.ne.s32.totalorder %s199, %s200
    %p212 = scmp.eq.s32.totalorder %s22, 1
    %p213 = por %p211, %p212
    %p215 = scmp.ne.s32.totalorder %s200, %s214
    %p216 = scmp.eq.s32.totalorder %s22, 0
    %p217 = por %p215, %p216
    %s219 = sadd.s32 %s218, 1
    %p222 = scmp.eq.s32.totalorder %s16, 1
    %p223 = scmp.ne.s32.totalorder %s218, %s220
    %p224 = scmp.eq.s32.totalorder %s16, 0
    %p225 = por %p223, %p224
    %p226 = scmp.ne.s32.totalorder %s218, %s220
    %p227 = scmp.eq.s32.totalorder %s21, 1
    %p228 = por %p226, %p227
    %p229 = scmp.ne.s32.totalorder %s220, %s221
    %p230 = scmp.eq.s32.totalorder %s21, 0
    %p231 = por %p229, %p230
    %p232 = scmp.ne.s32.totalorder %s220, %s221
    %p233 = scmp.eq.s32.totalorder %s22, 1
    %p234 = por %p232, %p233
    %p236 = scmp.ne.s32.totalorder %s221, %s235
    %p237 = scmp.eq.s32.totalorder %s22, 0
    %p238 = por %p236, %p237
    %s239 = ssub.s32 %s16, %s23
    %p240 = scmp.eq.s32.totalorder %s239, 0
    %s242 = sadd.s32 %s241, 1
    %s243 = scalar_select %p240, %s241, %s242
    %p246 = pneg %p240
    %p247 = scmp.eq.s32.totalorder %s16, 1
    %p248 = por %p246, %p247
    %p249 = scmp.ne.s32.totalorder %s241, %s244
    %p250 = scmp.eq.s32.totalorder %s16, 0
    %p251 = por %p249, %p250
    %p252 = scmp.ne.s32.totalorder %s241, %s244
    %p253 = scmp.eq.s32.totalorder %s21, 1
    %p254 = por %p252, %p253
    %p255 = scmp.ne.s32.totalorder %s244, %s245
    %p256 = scmp.eq.s32.totalorder %s21, 0
    %p257 = por %p255, %p256
    %p258 = scmp.ne.s32.totalorder %s244, %s245
    %p259 = scmp.eq.s32.totalorder %s22, 1
    %p260 = por %p258, %p259
    %p262 = scmp.ne.s32.totalorder %s245, %s261
    %p263 = scmp.eq.s32.totalorder %s22, 0
    %p264 = por %p262, %p263
    %p265 = scmp.le.s32.totalorder 1, %s16
    %p266 = scmp.lt.s32.totalorder %s16, 3
    %p267 = pnand %p265, %p266
    %p268 = pneg %p267
    // Predicated region
    $region9: #{inverted_residual.1} parent=5 // pred_check
      _
    $region10: #{inverted_residual.1} parent=5 // pred_check_branch
      %270 = sbr.rel (%p267) target = $region12
    $region11: #{inverted_residual.1} parent=5 // pred_region
      %s271 = ssub.s32 %s16, 1
      // Predicated region
      $region13: #{inverted_residual.1} parent=11 // pred_check
        %p272 = pneg %p63
      $region14: #{inverted_residual.1} parent=11 // pred_check_branch
        %274 = sbr.rel (%p272) target = $region16
      $region15: #{inverted_residual.1} parent=11 // pred_region
        _
      $region16: #{inverted_residual.1} parent=11 // pred_fallthru
        _
      // Predicated region
      $region17: #{inverted_residual.1} parent=11 // pred_check
        %p275 = pneg %p84
      $region18: #{inverted_residual.1} parent=11 // pred_check_branch
        %277 = sbr.rel (%p275) target = $region20
      $region19: #{inverted_residual.1} parent=11 // pred_region
        _
      $region20: #{inverted_residual.1} parent=11 // pred_fallthru
        _
      // Predicated region
      $region21: #{inverted_residual.1} parent=11 // pred_check
        %p278 = pneg %p105
      $region22: #{inverted_residual.1} parent=11 // pred_check_branch
        %280 = sbr.rel (%p278) target = $region24
      $region23: #{inverted_residual.1} parent=11 // pred_region
        _
      $region24: #{inverted_residual.1} parent=11 // pred_fallthru
        _
      // Predicated region
      $region25: #{inverted_residual.1} parent=11 // pred_check
        %p281 = pneg %p126
      $region26: #{inverted_residual.1} parent=11 // pred_check_branch
        %283 = sbr.rel (%p281) target = $region28
      $region27: #{inverted_residual.1} parent=11 // pred_region
        _
      $region28: #{inverted_residual.1} parent=11 // pred_fallthru
        _
      // Predicated region
      $region29: #{inverted_residual.1} parent=11 // pred_check
        %p284 = pneg %p147
      $region30: #{inverted_residual.1} parent=11 // pred_check_branch
        %286 = sbr.rel (%p284) target = $region32
      $region31: #{inverted_residual.1} parent=11 // pred_region
        _
      $region32: #{inverted_residual.1} parent=11 // pred_fallthru
        _
      // Predicated region
      $region33: #{inverted_residual.1} parent=11 // pred_check
        %p287 = pneg %p168
      $region34: #{inverted_residual.1} parent=11 // pred_check_branch
        %289 = sbr.rel (%p287) target = $region36
      $region35: #{inverted_residual.1} parent=11 // pred_region
        _
      $region36: #{inverted_residual.1} parent=11 // pred_fallthru
        _
      // Predicated region
      $region37: #{inverted_residual.1} parent=11 // pred_check
        %p290 = pneg %p189
      $region38: #{inverted_residual.1} parent=11 // pred_check_branch
        %292 = sbr.rel (%p290) target = $region40
      $region39: #{inverted_residual.1} parent=11 // pred_region
        _
      $region40: #{inverted_residual.1} parent=11 // pred_fallthru
        _
      // Predicated region
      $region41: #{inverted_residual.1} parent=11 // pred_check
        %p293 = pneg %p210
      $region42: #{inverted_residual.1} parent=11 // pred_check_branch
        %295 = sbr.rel (%p293) target = $region44
      $region43: #{inverted_residual.1} parent=11 // pred_region
        _
      $region44: #{inverted_residual.1} parent=11 // pred_fallthru
        _
      // Predicated region
      $region45: #{inverted_residual.1} parent=11 // pred_check
        %p296 = pneg %p231
      $region46: #{inverted_residual.1} parent=11 // pred_check_branch
        %298 = sbr.rel (%p296) target = $region48
      $region47: #{inverted_residual.1} parent=11 // pred_region
        _
      $region48: #{inverted_residual.1} parent=11 // pred_fallthru
        _
    $region12: #{inverted_residual.1} parent=5 // pred_fallthru
      _
    %p299 = scmp.lt.s32.totalorder %s16, 2
    // Predicated region
    $region49: #{inverted_residual.1} parent=5 // pred_check
      %p300 = pneg %p299
    $region50: #{inverted_residual.1} parent=5 // pred_check_branch
      %302 = sbr.rel (%p300) target = $region52
    $region51: #{inverted_residual.1} parent=5 // pred_region
      // Predicated region
      $region53: #{inverted_residual.1} parent=51 // pred_check
        %p303 = pneg %p36
      $region54: #{inverted_residual.1} parent=51 // pred_check_branch
        %305 = sbr.rel (%p303) target = $region56
      $region55: #{inverted_residual.1} parent=51 // pred_region
        %p306 = scmp.lt.s32.totalorder %s16, 1
        %s307 = scalar_select %p306, %s16, 1
        %s308 = smul.addr %s307, 2
        %s309 = smul.addr %s308, 4
        %s310 = scalar_lea.vmem %s0, %s309
      $region56: #{inverted_residual.1} parent=51 // pred_fallthru
        _
    $region52: #{inverted_residual.1} parent=5 // pred_fallthru
      _
    %p311 = scmp.le.s32.totalorder 1, %s16
    %p312 = scmp.lt.s32.totalorder %s16, 3
    %p313 = pnand %p311, %p312
    %p314 = pneg %p313
    // Predicated region
    $region57: #{inverted_residual.1} parent=5 // pred_check
      _
    $region58: #{inverted_residual.1} parent=5 // pred_check_branch
      %316 = sbr.rel (%p313) target = $region60
    $region59: #{inverted_residual.1} parent=5 // pred_region
      %s317 = ssub.s32 %s16, 1
      %p318 = scmp.lt.s32.totalorder %s21, 1
      %s319 = scalar_select %p318, %s21, 1
      %s320 = smul.addr %s319, 2
      %s321 = smul.addr %s320, 4
      %s322 = scalar_lea.vmem %s0, %s321
      %p323 = pneg %p42
      %p324 = pneg %p39
      %p325 = pneg %p63
      %p326 = pneg %p60
      %p327 = pneg %p84
      %p328 = pneg %p81
      %p329 = pneg %p105
      %p330 = pneg %p102
      %p331 = pneg %p126
      %p332 = pneg %p123
      %p333 = pneg %p147
      %p334 = pneg %p144
      %p335 = pneg %p168
      %p336 = pneg %p165
      %p337 = pneg %p189
      %p338 = pneg %p186
      %p339 = pneg %p210
      %p340 = pneg %p207
      %p341 = pneg %p231
      %p342 = pneg %p228
      %p343 = pneg %p257
      %p344 = pneg %p254
      %p345 = scmp.lt.s32.totalorder %s21, 1
      %s346 = scalar_select %p345, %s21, 1
      %s347 = smul.addr %s346, 2
      %s348 = smul.addr %s347, 4
      %s349 = scalar_lea.vmem %s10, %s348
      %p350 = scmp.lt.s32.totalorder %s21, 1
      %s351 = scalar_select %p350, %s21, 1
      %s352 = smul.addr %s351, 2
      %s353 = smul.addr %s352, 4
      %s354 = scalar_lea.vmem %s0, %s353
      %p355 = scmp.lt.s32.totalorder %s21, 1
      %s356 = scalar_select %p355, %s21, 1
      %s357 = smul.addr %s356, 2
      %s358 = smul.addr %s357, 4
      %s359 = scalar_lea.vmem %s10, %s358
      %v361 = vld [vmem:[%s354] sm:$0xff]
      %v363 = vcombine.high %v361, %v361
      %v365 = vpack.c.bf16 %v361, %v361
      %v366 = vpack.c.bf16 %v363, %v363
      %v367 = vld [vmem:[%s1] sm:$0x3]
      %368 = vxpose.xlu0.c.b16.start [1/8] %v365, 128
      %369 = vxpose.xlu0.c.b16.cont [2/8] 0, 128
      %370 = vxpose.xlu0.c.b16.cont [3/8] 0, 128
      %371 = vxpose.xlu0.c.b16.cont [4/8] 0, 128
      %372 = vxpose.xlu0.c.b16.cont [5/8] 0, 128
      %373 = vxpose.xlu0.c.b16.cont [6/8] 0, 128
      %374 = vxpose.xlu0.c.b16.cont [7/8] 0, 128
      %375 = vxpose.xlu0.c.b16.end [8/8] 0, 128
      %v376 = vpop.trf.xlu0
      %v377 = vpop.trf.xlu0
      %v378 = vpop.trf.xlu0
      %v379 = vpop.trf.xlu0
      %v380 = vpop.trf.xlu0
      %v381 = vpop.trf.xlu0
      %v382 = vpop.trf.xlu0
      %v383 = vpop.trf.xlu0
      %384 = vxpose.xlu0.c.b16.start [1/8] %v366, 128
      %385 = vxpose.xlu0.c.b16.cont [2/8] 0, 128
      %386 = vxpose.xlu0.c.b16.cont [3/8] 0, 128
      %387 = vxpose.xlu0.c.b16.cont [4/8] 0, 128
      %388 = vxpose.xlu0.c.b16.cont [5/8] 0, 128
      %389 = vxpose.xlu0.c.b16.cont [6/8] 0, 128
      %390 = vxpose.xlu0.c.b16.cont [7/8] 0, 128
      %391 = vxpose.xlu0.c.b16.end [8/8] 0, 128
      %v392 = vpop.trf.xlu0
      %v393 = vpop.trf.xlu0
      %v394 = vpop.trf.xlu0
      %v395 = vpop.trf.xlu0
      %v396 = vpop.trf.xlu0
      %v397 = vpop.trf.xlu0
      %v398 = vpop.trf.xlu0
      %v399 = vpop.trf.xlu0
      %vm400 = vcmask 31744
      %v402 = vsel %vm400, %v376, 0
      %v405 = vsel %vm400, %v377, 0
      %v408 = vsel %vm400, %v378, 0
      %v411 = vsel %vm400, %v379, 0
      %v414 = vsel %vm400, %v380, 0
      %v417 = vsel %vm400, %v381, 0
      %v420 = vsel %vm400, %v382, 0
      %v423 = vsel %vm400, %v383, 0
      %v426 = vsel %vm400, %v392, 0
      %v429 = vsel %vm400, %v393, 0
      %v432 = vsel %vm400, %v394, 0
      %v435 = vsel %vm400, %v395, 0
      %v438 = vsel %vm400, %v396, 0
      %v441 = vsel %vm400, %v397, 0
      %v444 = vsel %vm400, %v398, 0
      %v447 = vsel %vm400, %v399, 0
      %vm449 = vcmask 1041408
      %v451 = vsel %vm449, %v367, 0
      %453 = vmatprep.subr.bf16.mxu0 0
      %454 = vmatpush1.bf16.msra.mxu0 0
      %455 = vmatprep.subr.bf16.mxu0 0
      %456 = vmatpush1.bf16.msra.mxu0 0
      %457 = vmatprep.subr.bf16.mxu0 0
      %458 = vmatpush1.bf16.msra.mxu0 0
      %459 = vmatprep.subr.bf16.mxu0 0
      %460 = vmatpush1.bf16.msra.mxu0 0
      %461 = vmatprep.subr.bf16.mxu0 0
      %462 = vmatpush1.bf16.msra.mxu0 0
      %463 = vmatprep.subr.bf16.mxu0 0
      %464 = vmatpush1.bf16.msra.mxu0 0
      %465 = vmatprep.subr.bf16.mxu0 0
      %466 = vmatpush1.bf16.msra.mxu0 0
      %467 = vmatprep.subr.bf16.mxu0 0
      %468 = vmatpush1.bf16.msra.mxu0 %v451
      %469 = vmatprep.subr.bf16.mxu0 0
      %470 = vmatpush2.bf16.msra.mxu0 0
      %471 = vmatprep.subr.bf16.mxu0 0
      %472 = vmatpush2.bf16.msra.mxu0 0
      %473 = vmatprep.subr.bf16.mxu0 0
      %474 = vmatpush2.bf16.msra.mxu0 0
      %475 = vmatprep.subr.bf16.mxu0 0
      %476 = vmatpush2.bf16.msra.mxu0 0
      %477 = vmatprep.subr.bf16.mxu0 0
      %478 = vmatpush2.bf16.msra.mxu0 0
      %479 = vmatprep.subr.bf16.mxu0 0
      %480 = vmatpush2.bf16.msra.mxu0 0
      %481 = vmatprep.subr.bf16.mxu0 0
      %482 = vmatpush2.bf16.msra.mxu0 0
      %483 = vmatprep.subr.bf16.mxu0 0
      %484 = vmatpush2.bf16.msra.mxu0 0
      %485 = vmatprep.mubr.bf16.mxu0 0
      %486 = vmatmul.mubr.bf16.gmra.mxu0 %v402
      %v487 = vpop.f32.mrf.mxu0
      %v488 = vadd.f32 0.0, %v487
      %v489 = vpop.f32.mrf.mxu0
      %v490 = vpop.f32.mrf.mxu0
      %v491 = vadd.f32 0.0, %v490
      %v492 = vpop.f32.mrf.mxu0
      %493 = vmatprep.mubr.bf16.mxu0 0
      %494 = vmatmul.mubr.bf16.gmra.mxu0 %v405
      %v495 = vpop.f32.mrf.mxu0
      %v496 = vadd.f32 0.0, %v495
      %v497 = vpop.f32.mrf.mxu0
      %v498 = vpop.f32.mrf.mxu0
      %v499 = vadd.f32 0.0, %v498
      %v500 = vpop.f32.mrf.mxu0
      %501 = vmatprep.mubr.bf16.mxu0 0
      %502 = vmatmul.mubr.bf16.gmra.mxu0 %v408
      %v503 = vpop.f32.mrf.mxu0
      %v504 = vadd.f32 0.0, %v503
      %v505 = vpop.f32.mrf.mxu0
      %v506 = vpop.f32.mrf.mxu0
      %v507 = vadd.f32 0.0, %v506
      %v508 = vpop.f32.mrf.mxu0
      %509 = vmatprep.mubr.bf16.mxu0 0
      %510 = vmatmul.mubr.bf16.gmra.mxu0 %v411
      %v511 = vpop.f32.mrf.mxu0
      %v512 = vadd.f32 0.0, %v511
      %v513 = vpop.f32.mrf.mxu0
      %v514 = vpop.f32.mrf.mxu0
      %v515 = vadd.f32 0.0, %v514
      %v516 = vpop.f32.mrf.mxu0
      %517 = vmatprep.mubr.bf16.mxu0 0
      %518 = vmatmul.mubr.bf16.gmra.mxu0 %v414
      %v519 = vpop.f32.mrf.mxu0
      %v520 = vadd.f32 0.0, %v519
      %v521 = vpop.f32.mrf.mxu0
      %v522 = vpop.f32.mrf.mxu0
      %v523 = vadd.f32 0.0, %v522
      %v524 = vpop.f32.mrf.mxu0
      %525 = vmatprep.mubr.bf16.mxu0 0
      %526 = vmatmul.mubr.bf16.gmra.mxu0 %v417
      %v527 = vpop.f32.mrf.mxu0
      %v528 = vadd.f32 0.0, %v527
      %v529 = vpop.f32.mrf.mxu0
      %v530 = vpop.f32.mrf.mxu0
      %v531 = vadd.f32 0.0, %v530
      %v532 = vpop.f32.mrf.mxu0
      %533 = vmatprep.mubr.bf16.mxu0 0
      %534 = vmatmul.mubr.bf16.gmra.mxu0 %v420
      %v535 = vpop.f32.mrf.mxu0
      %v536 = vadd.f32 0.0, %v535
      %v537 = vpop.f32.mrf.mxu0
      %v538 = vpop.f32.mrf.mxu0
      %v539 = vadd.f32 0.0, %v538
      %v540 = vpop.f32.mrf.mxu0
      %541 = vmatprep.mubr.bf16.mxu0 0
      %542 = vmatmul.mubr.bf16.gmra.mxu0 %v423
      %v543 = vpop.f32.mrf.mxu0
      %v544 = vadd.f32 0.0, %v543
      %v545 = vpop.f32.mrf.mxu0
      %v546 = vpop.f32.mrf.mxu0
      %v547 = vadd.f32 0.0, %v546
      %v548 = vpop.f32.mrf.mxu0
      %549 = vmatprep.mubr.bf16.mxu0 0
      %550 = vmatmul.mubr.bf16.gmra.mxu0 %v426
      %v551 = vpop.f32.mrf.mxu0
      %v552 = vadd.f32 0.0, %v551
      %v553 = vpop.f32.mrf.mxu0
      %v554 = vpop.f32.mrf.mxu0
      %v555 = vadd.f32 0.0, %v554
      %v556 = vpop.f32.mrf.mxu0
      %557 = vmatprep.mubr.bf16.mxu0 0
      %558 = vmatmul.mubr.bf16.gmra.mxu0 %v429
      %v559 = vpop.f32.mrf.mxu0
      %v560 = vadd.f32 0.0, %v559
      %v561 = vpop.f32.mrf.mxu0
      %v562 = vpop.f32.mrf.mxu0
      %v563 = vadd.f32 0.0, %v562
      %v564 = vpop.f32.mrf.mxu0
      %565 = vmatprep.mubr.bf16.mxu0 0
      %566 = vmatmul.mubr.bf16.gmra.mxu0 %v432
      %v567 = vpop.f32.mrf.mxu0
      %v568 = vadd.f32 0.0, %v567
      %v569 = vpop.f32.mrf.mxu0
      %v570 = vpop.f32.mrf.mxu0
      %v571 = vadd.f32 0.0, %v570
      %v572 = vpop.f32.mrf.mxu0
      %573 = vmatprep.mubr.bf16.mxu0 0
      %574 = vmatmul.mubr.bf16.gmra.mxu0 %v435
      %v575 = vpop.f32.mrf.mxu0
      %v576 = vadd.f32 0.0, %v575
      %v577 = vpop.f32.mrf.mxu0
      %v578 = vpop.f32.mrf.mxu0
      %v579 = vadd.f32 0.0, %v578
      %v580 = vpop.f32.mrf.mxu0
      %581 = vmatprep.mubr.bf16.mxu0 0
      %582 = vmatmul.mubr.bf16.gmra.mxu0 %v438
      %v583 = vpop.f32.mrf.mxu0
      %v584 = vadd.f32 0.0, %v583
      %v585 = vpop.f32.mrf.mxu0
      %v586 = vpop.f32.mrf.mxu0
      %v587 = vadd.f32 0.0, %v586
      %v588 = vpop.f32.mrf.mxu0
      %589 = vmatprep.mubr.bf16.mxu0 0
      %590 = vmatmul.mubr.bf16.gmra.mxu0 %v441
      %v591 = vpop.f32.mrf.mxu0
      %v592 = vadd.f32 0.0, %v591
      %v593 = vpop.f32.mrf.mxu0
      %v594 = vpop.f32.mrf.mxu0
      %v595 = vadd.f32 0.0, %v594
      %v596 = vpop.f32.mrf.mxu0
      %597 = vmatprep.mubr.bf16.mxu0 0
      %598 = vmatmul.mubr.bf16.gmra.mxu0 %v444
      %v599 = vpop.f32.mrf.mxu0
      %v600 = vadd.f32 0.0, %v599
      %v601 = vpop.f32.mrf.mxu0
      %v602 = vpop.f32.mrf.mxu0
      %v603 = vadd.f32 0.0, %v602
      %v604 = vpop.f32.mrf.mxu0
      %605 = vmatprep.mubr.bf16.mxu0 0
      %606 = vmatmul.mubr.bf16.gmra.mxu0 %v447
      %v607 = vpop.f32.mrf.mxu0
      %v608 = vadd.f32 0.0, %v607
      %v609 = vpop.f32.mrf.mxu0
      %v610 = vpop.f32.mrf.mxu0
      %v611 = vadd.f32 0.0, %v610
      %v612 = vpop.f32.mrf.mxu0
      %613 = vdwg.mxu0
      %v614 = vld [vmem:[%s2] sm:$0x1]
      %v616 = vlaneseq
      %v617 = vshrl.u32 %v616, 7
      %v618 = vsub.s32 0, %v617
      %v619 = vrot.slane %v614, %v618
      %v621 = vmul.f32 %v488, %v619
      %v622 = vmul.f32 %v491, %v619
      %v623 = vmul.f32 %v496, %v619
      %v624 = vmul.f32 %v499, %v619
      %v625 = vmul.f32 %v504, %v619
      %v626 = vmul.f32 %v507, %v619
      %v627 = vmul.f32 %v512, %v619
      %v628 = vmul.f32 %v515, %v619
      %v629 = vmul.f32 %v520, %v619
      %v630 = vmul.f32 %v523, %v619
      %v631 = vmul.f32 %v528, %v619
      %v632 = vmul.f32 %v531, %v619
      %v633 = vmul.f32 %v536, %v619
      %v634 = vmul.f32 %v539, %v619
      %v635 = vmul.f32 %v544, %v619
      %v636 = vmul.f32 %v547, %v619
      %v637 = vmul.f32 %v552, %v619
      %v638 = vmul.f32 %v555, %v619
      %v639 = vmul.f32 %v560, %v619
      %v640 = vmul.f32 %v563, %v619
      %v641 = vmul.f32 %v568, %v619
      %v642 = vmul.f32 %v571, %v619
      %v643 = vmul.f32 %v576, %v619
      %v644 = vmul.f32 %v579, %v619
      %v645 = vmul.f32 %v584, %v619
      %v646 = vmul.f32 %v587, %v619
      %v647 = vmul.f32 %v592, %v619
      %v648 = vmul.f32 %v595, %v619
      %v649 = vmul.f32 %v600, %v619
      %v650 = vmul.f32 %v603, %v619
      %v651 = vmul.f32 %v608, %v619
      %v652 = vmul.f32 %v611, %v619
      %v653 = vld [vmem:[%s3] sm:$0x1]
      %v655 = vlaneseq
      %v656 = vshrl.u32 %v655, 7
      %v657 = vsub.s32 0, %v656
      %v658 = vrot.slane %v653, %v657
      %v660 = vadd.f32 %v621, %v658
      %v661 = vadd.f32 %v622, %v658
      %v662 = vadd.f32 %v623, %v658
      %v663 = vadd.f32 %v624, %v658
      %v664 = vadd.f32 %v625, %v658
      %v665 = vadd.f32 %v626, %v658
      %v666 = vadd.f32 %v627, %v658
      %v667 = vadd.f32 %v628, %v658
      %v668 = vadd.f32 %v629, %v658
      %v669 = vadd.f32 %v630, %v658
      %v670 = vadd.f32 %v631, %v658
      %v671 = vadd.f32 %v632, %v658
      %v672 = vadd.f32 %v633, %v658
      %v673 = vadd.f32 %v634, %v658
      %v674 = vadd.f32 %v635, %v658
      %v675 = vadd.f32 %v636, %v658
      %v676 = vadd.f32 %v637, %v658
      %v677 = vadd.f32 %v638, %v658
      %v678 = vadd.f32 %v639, %v658
      %v679 = vadd.f32 %v640, %v658
      %v680 = vadd.f32 %v641, %v658
      %v681 = vadd.f32 %v642, %v658
      %v682 = vadd.f32 %v643, %v658
      %v683 = vadd.f32 %v644, %v658
      %v684 = vadd.f32 %v645, %v658
      %v685 = vadd.f32 %v646, %v658
      %v686 = vadd.f32 %v647, %v658
      %v687 = vadd.f32 %v648, %v658
      %v688 = vadd.f32 %v649, %v658
      %v689 = vadd.f32 %v650, %v658
      %v690 = vadd.f32 %v651, %v658
      %v691 = vadd.f32 %v652, %v658
      %v692 = vmax.f32 %v660, 0.0
      %v693 = vmax.f32 %v661, 0.0
      %v694 = vmax.f32 %v662, 0.0
      %v695 = vmax.f32 %v663, 0.0
      %v696 = vmax.f32 %v664, 0.0
      %v697 = vmax.f32 %v665, 0.0
      %v698 = vmax.f32 %v666, 0.0
      %v699 = vmax.f32 %v667, 0.0
      %v700 = vmax.f32 %v668, 0.0
      %v701 = vmax.f32 %v669, 0.0
      %v702 = vmax.f32 %v670, 0.0
      %v703 = vmax.f32 %v671, 0.0
      %v704 = vmax.f32 %v672, 0.0
      %v705 = vmax.f32 %v673, 0.0
      %v706 = vmax.f32 %v674, 0.0
      %v707 = vmax.f32 %v675, 0.0
      %v708 = vmax.f32 %v676, 0.0
      %v709 = vmax.f32 %v677, 0.0
      %v710 = vmax.f32 %v678, 0.0
      %v711 = vmax.f32 %v679, 0.0
      %v712 = vmax.f32 %v680, 0.0
      %v713 = vmax.f32 %v681, 0.0
      %v714 = vmax.f32 %v682, 0.0
      %v715 = vmax.f32 %v683, 0.0
      %v716 = vmax.f32 %v684, 0.0
      %v717 = vmax.f32 %v685, 0.0
      %v718 = vmax.f32 %v686, 0.0
      %v719 = vmax.f32 %v687, 0.0
      %v720 = vmax.f32 %v688, 0.0
      %v721 = vmax.f32 %v689, 0.0
      %v722 = vmax.f32 %v690, 0.0
      %v723 = vmax.f32 %v691, 0.0
      %v724 = vmin.f32 %v692, 6.0
      %v725 = vmin.f32 %v693, 6.0
      %v726 = vmin.f32 %v694, 6.0
      %v727 = vmin.f32 %v695, 6.0
      %v728 = vmin.f32 %v696, 6.0
      %v729 = vmin.f32 %v697, 6.0
      %v730 = vmin.f32 %v698, 6.0
      %v731 = vmin.f32 %v699, 6.0
      %v732 = vmin.f32 %v700, 6.0
      %v733 = vmin.f32 %v701, 6.0
      %v734 = vmin.f32 %v702, 6.0
      %v735 = vmin.f32 %v703, 6.0
      %v736 = vmin.f32 %v704, 6.0
      %v737 = vmin.f32 %v705, 6.0
      %v738 = vmin.f32 %v706, 6.0
      %v739 = vmin.f32 %v707, 6.0
      %v740 = vmin.f32 %v708, 6.0
      %v741 = vmin.f32 %v709, 6.0
      %v742 = vmin.f32 %v710, 6.0
      %v743 = vmin.f32 %v711, 6.0
      %v744 = vmin.f32 %v712, 6.0
      %v745 = vmin.f32 %v713, 6.0
      %v746 = vmin.f32 %v714, 6.0
      %v747 = vmin.f32 %v715, 6.0
      %v748 = vmin.f32 %v716, 6.0
      %v749 = vmin.f32 %v717, 6.0
      %v750 = vmin.f32 %v718, 6.0
      %v751 = vmin.f32 %v719, 6.0
      %v752 = vmin.f32 %v720, 6.0
      %v753 = vmin.f32 %v721, 6.0
      %v754 = vmin.f32 %v722, 6.0
      %v755 = vmin.f32 %v723, 6.0
      %756 = vst [vmem:[#allocation2] sm:$0xff] 0.0
      %757 = vst [vmem:[#allocation2 + $0x8] sm:$0xff] 0.0
      %758 = vst [vmem:[#allocation2 + $0x10] sm:$0x3] 0.0
      %s759 = scalar_lea.vmem [#allocation2], 408
      %760 = vst [vmem:[%s759] sm:$0xff] 0.0
      %761 = vst [vmem:[%s759 + $0x8] sm:$0xff] 0.0
      %762 = vst [vmem:[%s759 + $0x10] sm:$0x3] 0.0
      %763 = vst [vmem:[#allocation2] sm:$0x1] 0.0
      %764 = vst [vmem:[#allocation2 + $0x18] sm:$0x1] 0.0
      %765 = vst [vmem:[#allocation2 + $0x30] sm:$0x1] 0.0
      %766 = vst [vmem:[#allocation2 + $0x48] sm:$0x1] 0.0
      %767 = vst [vmem:[#allocation2 + $0x60] sm:$0x1] 0.0
      %768 = vst [vmem:[#allocation2 + $0x78] sm:$0x1] 0.0
      %769 = vst [vmem:[#allocation2 + $0x90] sm:$0x1] 0.0
      %770 = vst [vmem:[#allocation2 + $0xa8] sm:$0x1] 0.0
      %771 = vst [vmem:[#allocation2 + $0xc0] sm:$0x1] 0.0
      %772 = vst [vmem:[#allocation2 + $0xd8] sm:$0x1] 0.0
      %773 = vst [vmem:[#allocation2 + $0xf0] sm:$0x1] 0.0
      %774 = vst [vmem:[#allocation2 + $0x108] sm:$0x1] 0.0
      %775 = vst [vmem:[#allocation2 + $0x120] sm:$0x1] 0.0
      %776 = vst [vmem:[#allocation2 + $0x138] sm:$0x1] 0.0
      %777 = vst [vmem:[#allocation2 + $0x150] sm:$0x1] 0.0
      %778 = vst [vmem:[#allocation2 + $0x168] sm:$0x1] 0.0
      %779 = vst [vmem:[#allocation2 + $0x180] sm:$0x1] 0.0
      %780 = vst [vmem:[#allocation2 + $0x198] sm:$0x1] 0.0
      %781 = vst [vmem:[#allocation2 + $0x11] sm:$0x1] 0.0
      %782 = vst [vmem:[#allocation2 + $0x29] sm:$0x1] 0.0
      %783 = vst [vmem:[#allocation2 + $0x41] sm:$0x1] 0.0
      %784 = vst [vmem:[#allocation2 + $0x59] sm:$0x1] 0.0
      %785 = vst [vmem:[#allocation2 + $0x71] sm:$0x1] 0.0
      %786 = vst [vmem:[#allocation2 + $0x89] sm:$0x1] 0.0
      %787 = vst [vmem:[#allocation2 + $0xa1] sm:$0x1] 0.0
      %788 = vst [vmem:[#allocation2 + $0xb9] sm:$0x1] 0.0
      %789 = vst [vmem:[#allocation2 + $0xd1] sm:$0x1] 0.0
      %790 = vst [vmem:[#allocation2 + $0xe9] sm:$0x1] 0.0
      %791 = vst [vmem:[#allocation2 + $0x101] sm:$0x1] 0.0
      %792 = vst [vmem:[#allocation2 + $0x119] sm:$0x1] 0.0
      %793 = vst [vmem:[#allocation2 + $0x131] sm:$0x1] 0.0
      %794 = vst [vmem:[#allocation2 + $0x149] sm:$0x1] 0.0
      %795 = vst [vmem:[#allocation2 + $0x161] sm:$0x1] 0.0
      %796 = vst [vmem:[#allocation2 + $0x179] sm:$0x1] 0.0
      %797 = vst [vmem:[#allocation2 + $0x191] sm:$0x1] 0.0
      %798 = vst [vmem:[#allocation2 + $0x1a9] sm:$0x1] 0.0
      %s799 = scalar_lea.vmem [#allocation2], 24
      %800 = vst [vmem:[%s799 + $0x1] sm:$0xff] %v724
      %801 = vst [vmem:[%s799 + $0x9] sm:$0xff] %v725
      %802 = vst [vmem:[%s799 + $0x19] sm:$0xff] %v726
      %803 = vst [vmem:[%s799 + $0x21] sm:$0xff] %v727
      %804 = vst [vmem:[%s799 + $0x31] sm:$0xff] %v728
      %805 = vst [vmem:[%s799 + $0x39] sm:$0xff] %v729
      %806 = vst [vmem:[%s799 + $0x49] sm:$0xff] %v730
      %807 = vst [vmem:[%s799 + $0x51] sm:$0xff] %v731
      %808 = vst [vmem:[%s799 + $0x61] sm:$0xff] %v732
      %809 = vst [vmem:[%s799 + $0x69] sm:$0xff] %v733
      %810 = vst [vmem:[%s799 + $0x79] sm:$0xff] %v734
      %811 = vst [vmem:[%s799 + $0x81] sm:$0xff] %v735
      %812 = vst [vmem:[%s799 + $0x91] sm:$0xff] %v736
      %813 = vst [vmem:[%s799 + $0x99] sm:$0xff] %v737
      %814 = vst [vmem:[%s799 + $0xa9] sm:$0xff] %v738
      %815 = vst [vmem:[%s799 + $0xb1] sm:$0xff] %v739
      %816 = vst [vmem:[%s799 + $0xc1] sm:$0xff] %v740
      %817 = vst [vmem:[%s799 + $0xc9] sm:$0xff] %v741
      %818 = vst [vmem:[%s799 + $0xd9] sm:$0xff] %v742
      %819 = vst [vmem:[%s799 + $0xe1] sm:$0xff] %v743
      %820 = vst [vmem:[%s799 + $0xf1] sm:$0xff] %v744
      %821 = vst [vmem:[%s799 + $0xf9] sm:$0xff] %v745
      %822 = vst [vmem:[%s799 + $0x109] sm:$0xff] %v746
      %823 = vst [vmem:[%s799 + $0x111] sm:$0xff] %v747
      %824 = vst [vmem:[%s799 + $0x121] sm:$0xff] %v748
      %825 = vst [vmem:[%s799 + $0x129] sm:$0xff] %v749
      %826 = vst [vmem:[%s799 + $0x139] sm:$0xff] %v750
      %827 = vst [vmem:[%s799 + $0x141] sm:$0xff] %v751
      %828 = vst [vmem:[%s799 + $0x151] sm:$0xff] %v752
      %829 = vst [vmem:[%s799 + $0x159] sm:$0xff] %v753
      %830 = vst [vmem:[%s799 + $0x169] sm:$0xff] %v754
      %831 = vst [vmem:[%s799 + $0x171] sm:$0xff] %v755
      %v832 = vld [vmem:[#allocation2] sm:$0xff]
      %v833 = vld [vmem:[#allocation2 + $0x8] sm:$0xff]
      %v834 = vld [vmem:[#allocation2 + $0x10] sm:$0x3]
      %v835 = vld [vmem:[#allocation2 + $0x18] sm:$0xff]
      %v836 = vld [vmem:[#allocation2 + $0x20] sm:$0xff]
      %v837 = vld [vmem:[#allocation2 + $0x28] sm:$0x3]
      %v838 = vld [vmem:[#allocation2 + $0x30] sm:$0xff]
      %v839 = vld [vmem:[#allocation2 + $0x38] sm:$0xff]
      %v840 = vld [vmem:[#allocation2 + $0x40] sm:$0x3]
      %v841 = vld [vmem:[#allocation2 + $0x48] sm:$0xff]
      %v842 = vld [vmem:[#allocation2 + $0x50] sm:$0xff]
      %v843 = vld [vmem:[#allocation2 + $0x58] sm:$0x3]
      %v844 = vld [vmem:[#allocation2 + $0x60] sm:$0xff]
      %v845 = vld [vmem:[#allocation2 + $0x68] sm:$0xff]
      %v846 = vld [vmem:[#allocation2 + $0x70] sm:$0x3]
      %v847 = vld [vmem:[#allocation2 + $0x78] sm:$0xff]
      %v848 = vld [vmem:[#allocation2 + $0x80] sm:$0xff]
      %v849 = vld [vmem:[#allocation2 + $0x88] sm:$0x3]
      %v850 = vld [vmem:[#allocation2 + $0x90] sm:$0xff]
      %v851 = vld [vmem:[#allocation2 + $0x98] sm:$0xff]
      %v852 = vld [vmem:[#allocation2 + $0xa0] sm:$0x3]
      %v853 = vld [vmem:[#allocation2 + $0xa8] sm:$0xff]
      %v854 = vld [vmem:[#allocation2 + $0xb0] sm:$0xff]
      %v855 = vld [vmem:[#allocation2 + $0xb8] sm:$0x3]
      %v856 = vld [vmem:[#allocation2 + $0xc0] sm:$0xff]
      %v857 = vld [vmem:[#allocation2 + $0xc8] sm:$0xff]
      %v858 = vld [vmem:[#allocation2 + $0xd0] sm:$0x3]
      %v859 = vld [vmem:[#allocation2 + $0xd8] sm:$0xff]
      %v860 = vld [vmem:[#allocation2 + $0xe0] sm:$0xff]
      %v861 = vld [vmem:[#allocation2 + $0xe8] sm:$0x3]
      %v862 = vld [vmem:[#allocation2 + $0xf0] sm:$0xff]
      %v863 = vld [vmem:[#allocation2 + $0xf8] sm:$0xff]
      %v864 = vld [vmem:[#allocation2 + $0x100] sm:$0x3]
      %v865 = vld [vmem:[#allocation2 + $0x108] sm:$0xff]
      %v866 = vld [vmem:[#allocation2 + $0x110] sm:$0xff]
      %v867 = vld [vmem:[#allocation2 + $0x118] sm:$0x3]
      %v868 = vld [vmem:[#allocation2 + $0x120] sm:$0xff]
      %v869 = vld [vmem:[#allocation2 + $0x128] sm:$0xff]
      %v870 = vld [vmem:[#allocation2 + $0x130] sm:$0x3]
      %v871 = vld [vmem:[#allocation2 + $0x138] sm:$0xff]
      %v872 = vld [vmem:[#allocation2 + $0x140] sm:$0xff]
      %v873 = vld [vmem:[#allocation2 + $0x148] sm:$0x3]
      %v874 = vld [vmem:[#allocation2 + $0x150] sm:$0xff]
      %v875 = vld [vmem:[#allocation2 + $0x158] sm:$0xff]
      %v876 = vld [vmem:[#allocation2 + $0x160] sm:$0x3]
      %v877 = vld [vmem:[#allocation2 + $0x168] sm:$0xff]
      %v878 = vld [vmem:[#allocation2 + $0x170] sm:$0xff]
      %v879 = vld [vmem:[#allocation2 + $0x178] sm:$0x3]
      %v880 = vld [vmem:[#allocation2 + $0x180] sm:$0xff]
      %v881 = vld [vmem:[#allocation2 + $0x188] sm:$0xff]
      %v882 = vld [vmem:[#allocation2 + $0x190] sm:$0x3]
      %v883 = vld [vmem:[#allocation2 + $0x198] sm:$0xff]
      %v884 = vld [vmem:[#allocation2 + $0x1a0] sm:$0xff]
      %v885 = vld [vmem:[#allocation2 + $0x1a8] sm:$0x3]
      %v886 = vld [vmem:[%s4] sm:$0x7]
      %v887 = vld [vmem:[%s4 + $0x4] sm:$0x7]
      %v888 = vld [vmem:[%s4 + $0x8] sm:$0x7]
      %v889 = vlaneseq
      %v890 = vshrl.u32 %v889, 7
      %v891 = vsub.s32 0, %v890
      %v892 = vrot.slane %v886, %v891
      %v893 = vmul.f32 %v832, %v892
      %v894 = vmul.f32 %v833, %v892
      %v895 = vmul.f32 %v835, %v892
      %v896 = vmul.f32 %v836, %v892
      %v897 = vmul.f32 %v838, %v892
      %v898 = vmul.f32 %v839, %v892
      %v899 = vmul.f32 %v841, %v892
      %v900 = vmul.f32 %v842, %v892
      %v901 = vmul.f32 %v844, %v892
      %v902 = vmul.f32 %v845, %v892
      %v903 = vmul.f32 %v847, %v892
      %v904 = vmul.f32 %v848, %v892
      %v905 = vmul.f32 %v850, %v892
      %v906 = vmul.f32 %v851, %v892
      %v907 = vmul.f32 %v853, %v892
      %v908 = vmul.f32 %v854, %v892
      %v909 = vmul.f32 %v856, %v892
      %v910 = vmul.f32 %v857, %v892
      %v911 = vmul.f32 %v859, %v892
      %v912 = vmul.f32 %v860, %v892
      %v913 = vmul.f32 %v862, %v892
      %v914 = vmul.f32 %v863, %v892
      %v915 = vmul.f32 %v865, %v892
      %v916 = vmul.f32 %v866, %v892
      %v917 = vmul.f32 %v868, %v892
      %v918 = vmul.f32 %v869, %v892
      %v919 = vmul.f32 %v871, %v892
      %v920 = vmul.f32 %v872, %v892
      %v921 = vmul.f32 %v874, %v892
      %v922 = vmul.f32 %v875, %v892
      %v923 = vmul.f32 %v877, %v892
      %v924 = vmul.f32 %v878, %v892
      %v925 = vlaneseq
      %v926 = vshrl.u32 %v925, 7
      %v927 = vsub.s32 1, %v926
      %v928 = vrot.slane %v886, %v927
      %v929 = vmul.f32 %v832, %v928
      %v930 = vmul.f32 %v833, %v928
      %v931 = vmul.f32 %v834, %v928
      %v932 = vmul.f32 %v835, %v928
      %v933 = vmul.f32 %v836, %v928
      %v934 = vmul.f32 %v837, %v928
      %v935 = vmul.f32 %v838, %v928
      %v936 = vmul.f32 %v839, %v928
      %v937 = vmul.f32 %v840, %v928
      %v938 = vmul.f32 %v841, %v928
      %v939 = vmul.f32 %v842, %v928
      %v940 = vmul.f32 %v843, %v928
      %v941 = vmul.f32 %v844, %v928
      %v942 = vmul.f32 %v845, %v928
      %v943 = vmul.f32 %v846, %v928
      %v944 = vmul.f32 %v847, %v928
      %v945 = vmul.f32 %v848, %v928
      %v946 = vmul.f32 %v849, %v928
      %v947 = vmul.f32 %v850, %v928
      %v948 = vmul.f32 %v851, %v928
      %v949 = vmul.f32 %v852, %v928
      %v950 = vmul.f32 %v853, %v928
      %v951 = vmul.f32 %v854, %v928
      %v952 = vmul.f32 %v855, %v928
      %v953 = vmul.f32 %v856, %v928
      %v954 = vmul.f32 %v857, %v928
      %v955 = vmul.f32 %v858, %v928
      %v956 = vmul.f32 %v859, %v928
      %v957 = vmul.f32 %v860, %v928
      %v958 = vmul.f32 %v861, %v928
      %v959 = vmul.f32 %v862, %v928
      %v960 = vmul.f32 %v863, %v928
      %v961 = vmul.f32 %v864, %v928
      %v962 = vmul.f32 %v865, %v928
      %v963 = vmul.f32 %v866, %v928
      %v964 = vmul.f32 %v867, %v928
      %v965 = vmul.f32 %v868, %v928
      %v966 = vmul.f32 %v869, %v928
      %v967 = vmul.f32 %v870, %v928
      %v968 = vmul.f32 %v871, %v928
      %v969 = vmul.f32 %v872, %v928
      %v970 = vmul.f32 %v873, %v928
      %v971 = vmul.f32 %v874, %v928
      %v972 = vmul.f32 %v875, %v928
      %v973 = vmul.f32 %v876, %v928
      %v974 = vmul.f32 %v877, %v928
      %v975 = vmul.f32 %v878, %v928
      %v976 = vmul.f32 %v879, %v928
      %vm1025 = vcmask 1046528
      %v1026 = vrot.slane %v929, 1
      %v1027 = vrot.slane %v930, 1
      %v1028 = vsel %vm1025, %v1026, %v1027
      %v1029 = vrot.slane %v931, 1
      %v1030 = vsel %vm1025, %v1027, %v1029
      %v1031 = vrot.slane %v932, 1
      %v1032 = vrot.slane %v933, 1
      %v1033 = vsel %vm1025, %v1031, %v1032
      %v1034 = vrot.slane %v934, 1
      %v1035 = vsel %vm1025, %v1032, %v1034
      %v1036 = vrot.slane %v935, 1
      %v1037 = vrot.slane %v936, 1
      %v1038 = vsel %vm1025, %v1036, %v1037
      %v1039 = vrot.slane %v937, 1
      %v1040 = vsel %vm1025, %v1037, %v1039
      %v1041 = vrot.slane %v938, 1
      %v1042 = vrot.slane %v939, 1
      %v1043 = vsel %vm1025, %v1041, %v1042
      %v1044 = vrot.slane %v940, 1
      %v1045 = vsel %vm1025, %v1042, %v1044
      %v1046 = vrot.slane %v941, 1
      %v1047 = vrot.slane %v942, 1
      %v1048 = vsel %vm1025, %v1046, %v1047
      %v1049 = vrot.slane %v943, 1
      %v1050 = vsel %vm1025, %v1047, %v1049
      %v1051 = vrot.slane %v944, 1
      %v1052 = vrot.slane %v945, 1
      %v1053 = vsel %vm1025, %v1051, %v1052
      %v1054 = vrot.slane %v946, 1
      %v1055 = vsel %vm1025, %v1052, %v1054
      %v1056 = vrot.slane %v947, 1
      %v1057 = vrot.slane %v948, 1
      %v1058 = vsel %vm1025, %v1056, %v1057
      %v1059 = vrot.slane %v949, 1
      %v1060 = vsel %vm1025, %v1057, %v1059
      %v1061 = vrot.slane %v950, 1
      %v1062 = vrot.slane %v951, 1
      %v1063 = vsel %vm1025, %v1061, %v1062
      %v1064 = vrot.slane %v952, 1
      %v1065 = vsel %vm1025, %v1062, %v1064
      %v1066 = vrot.slane %v953, 1
      %v1067 = vrot.slane %v954, 1
      %v1068 = vsel %vm1025, %v1066, %v1067
      %v1069 = vrot.slane %v955, 1
      %v1070 = vsel %vm1025, %v1067, %v1069
      %v1071 = vrot.slane %v956, 1
      %v1072 = vrot.slane %v957, 1
      %v1073 = vsel %vm1025, %v1071, %v1072
      %v1074 = vrot.slane %v958, 1
      %v1075 = vsel %vm1025, %v1072, %v1074
      %v1076 = vrot.slane %v959, 1
      %v1077 = vrot.slane %v960, 1
      %v1078 = vsel %vm1025, %v1076, %v1077
      %v1079 = vrot.slane %v961, 1
      %v1080 = vsel %vm1025, %v1077, %v1079
      %v1081 = vrot.slane %v962, 1
      %v1082 = vrot.slane %v963, 1
      %v1083 = vsel %vm1025, %v1081, %v1082
      %v1084 = vrot.slane %v964, 1
      %v1085 = vsel %vm1025, %v1082, %v1084
      %v1086 = vrot.slane %v965, 1
      %v1087 = vrot.slane %v966, 1
      %v1088 = vsel %vm1025, %v1086, %v1087
      %v1089 = vrot.slane %v967, 1
      %v1090 = vsel %vm1025, %v1087, %v1089
      %v1091 = vrot.slane %v968, 1
      %v1092 = vrot.slane %v969, 1
      %v1093 = vsel %vm1025, %v1091, %v1092
      %v1094 = vrot.slane %v970, 1
      %v1095 = vsel %vm1025, %v1092, %v1094
      %v1096 = vrot.slane %v971, 1
      %v1097 = vrot.slane %v972, 1
      %v1098 = vsel %vm1025, %v1096, %v1097
      %v1099 = vrot.slane %v973, 1
      %v1100 = vsel %vm1025, %v1097, %v1099
      %v1101 = vrot.slane %v974, 1
      %v1102 = vrot.slane %v975, 1
      %v1103 = vsel %vm1025, %v1101, %v1102
      %v1104 = vrot.slane %v976, 1
      %v1105 = vsel %vm1025, %v1102, %v1104
      %v1138 = vadd.f32 %v893, %v1028
      %v1139 = vadd.f32 %v894, %v1030
      %v1140 = vadd.f32 %v895, %v1033
      %v1141 = vadd.f32 %v896, %v1035
      %v1142 = vadd.f32 %v897, %v1038
      %v1143 = vadd.f32 %v898, %v1040
      %v1144 = vadd.f32 %v899, %v1043
      %v1145 = vadd.f32 %v900, %v1045
      %v1146 = vadd.f32 %v901, %v1048
      %v1147 = vadd.f32 %v902, %v1050
      %v1148 = vadd.f32 %v903, %v1053
      %v1149 = vadd.f32 %v904, %v1055
      %v1150 = vadd.f32 %v905, %v1058
      %v1151 = vadd.f32 %v906, %v1060
      %v1152 = vadd.f32 %v907, %v1063
      %v1153 = vadd.f32 %v908, %v1065
      %v1154 = vadd.f32 %v909, %v1068
      %v1155 = vadd.f32 %v910, %v1070
      %v1156 = vadd.f32 %v911, %v1073
      %v1157 = vadd.f32 %v912, %v1075
      %v1158 = vadd.f32 %v913, %v1078
      %v1159 = vadd.f32 %v914, %v1080
      %v1160 = vadd.f32 %v915, %v1083
      %v1161 = vadd.f32 %v916, %v1085
      %v1162 = vadd.f32 %v917, %v1088
      %v1163 = vadd.f32 %v918, %v1090
      %v1164 = vadd.f32 %v919, %v1093
      %v1165 = vadd.f32 %v920, %v1095
      %v1166 = vadd.f32 %v921, %v1098
      %v1167 = vadd.f32 %v922, %v1100
      %v1168 = vadd.f32 %v923, %v1103
      %v1169 = vadd.f32 %v924, %v1105
      %v1170 = vlaneseq
      %v1171 = vshrl.u32 %v1170, 7
      %v1172 = vsub.s32 2, %v1171
      %v1173 = vrot.slane %v886, %v1172
      %v1174 = vmul.f32 %v832, %v1173
      %v1175 = vmul.f32 %v833, %v1173
      %v1176 = vmul.f32 %v834, %v1173
      %v1177 = vmul.f32 %v835, %v1173
      %v1178 = vmul.f32 %v836, %v1173
      %v1179 = vmul.f32 %v837, %v1173
      %v1180 = vmul.f32 %v838, %v1173
      %v1181 = vmul.f32 %v839, %v1173
      %v1182 = vmul.f32 %v840, %v1173
      %v1183 = vmul.f32 %v841, %v1173
      %v1184 = vmul.f32 %v842, %v1173
      %v1185 = vmul.f32 %v843, %v1173
      %v1186 = vmul.f32 %v844, %v1173
      %v1187 = vmul.f32 %v845, %v1173
      %v1188 = vmul.f32 %v846, %v1173
      %v1189 = vmul.f32 %v847, %v1173
      %v1190 = vmul.f32 %v848, %v1173
      %v1191 = vmul.f32 %v849, %v1173
      %v1192 = vmul.f32 %v850, %v1173
      %v1193 = vmul.f32 %v851, %v1173
      %v1194 = vmul.f32 %v852, %v1173
      %v1195 = vmul.f32 %v853, %v1173
      %v1196 = vmul.f32 %v854, %v1173
      %v1197 = vmul.f32 %v855, %v1173
      %v1198 = vmul.f32 %v856, %v1173
      %v1199 = vmul.f32 %v857, %v1173
      %v1200 = vmul.f32 %v858, %v1173
      %v1201 = vmul.f32 %v859, %v1173
      %v1202 = vmul.f32 %v860, %v1173
      %v1203 = vmul.f32 %v861, %v1173
      %v1204 = vmul.f32 %v862, %v1173
      %v1205 = vmul.f32 %v863, %v1173
      %v1206 = vmul.f32 %v864, %v1173
      %v1207 = vmul.f32 %v865, %v1173
      %v1208 = vmul.f32 %v866, %v1173
      %v1209 = vmul.f32 %v867, %v1173
      %v1210 = vmul.f32 %v868, %v1173
      %v1211 = vmul.f32 %v869, %v1173
      %v1212 = vmul.f32 %v870, %v1173
      %v1213 = vmul.f32 %v871, %v1173
      %v1214 = vmul.f32 %v872, %v1173
      %v1215 = vmul.f32 %v873, %v1173
      %v1216 = vmul.f32 %v874, %v1173
      %v1217 = vmul.f32 %v875, %v1173
      %v1218 = vmul.f32 %v876, %v1173
      %v1219 = vmul.f32 %v877, %v1173
      %v1220 = vmul.f32 %v878, %v1173
      %v1221 = vmul.f32 %v879, %v1173
      %vm1270 = vcmask 1045504
      %v1271 = vrot.slane %v1174, 2
      %v1272 = vrot.slane %v1175, 2
      %v1273 = vsel %vm1270, %v1271, %v1272
      %v1274 = vrot.slane %v1176, 2
      %v1275 = vsel %vm1270, %v1272, %v1274
      %v1276 = vrot.slane %v1177, 2
      %v1277 = vrot.slane %v1178, 2
      %v1278 = vsel %vm1270, %v1276, %v1277
      %v1279 = vrot.slane %v1179, 2
      %v1280 = vsel %vm1270, %v1277, %v1279
      %v1281 = vrot.slane %v1180, 2
      %v1282 = vrot.slane %v1181, 2
      %v1283 = vsel %vm1270, %v1281, %v1282
      %v1284 = vrot.slane %v1182, 2
      %v1285 = vsel %vm1270, %v1282, %v1284
      %v1286 = vrot.slane %v1183, 2
      %v1287 = vrot.slane %v1184, 2
      %v1288 = vsel %vm1270, %v1286, %v1287
      %v1289 = vrot.slane %v1185, 2
      %v1290 = vsel %vm1270, %v1287, %v1289
      %v1291 = vrot.slane %v1186, 2
      %v1292 = vrot.slane %v1187, 2
      %v1293 = vsel %vm1270, %v1291, %v1292
      %v1294 = vrot.slane %v1188, 2
      %v1295 = vsel %vm1270, %v1292, %v1294
      %v1296 = vrot.slane %v1189, 2
      %v1297 = vrot.slane %v1190, 2
      %v1298 = vsel %vm1270, %v1296, %v1297
      %v1299 = vrot.slane %v1191, 2
      %v1300 = vsel %vm1270, %v1297, %v1299
      %v1301 = vrot.slane %v1192, 2
      %v1302 = vrot.slane %v1193, 2
      %v1303 = vsel %vm1270, %v1301, %v1302
      %v1304 = vrot.slane %v1194, 2
      %v1305 = vsel %vm1270, %v1302, %v1304
      %v1306 = vrot.slane %v1195, 2
      %v1307 = vrot.slane %v1196, 2
      %v1308 = vsel %vm1270, %v1306, %v1307
      %v1309 = vrot.slane %v1197, 2
      %v1310 = vsel %vm1270, %v1307, %v1309
      %v1311 = vrot.slane %v1198, 2
      %v1312 = vrot.slane %v1199, 2
      %v1313 = vsel %vm1270, %v1311, %v1312
      %v1314 = vrot.slane %v1200, 2
      %v1315 = vsel %vm1270, %v1312, %v1314
      %v1316 = vrot.slane %v1201, 2
      %v1317 = vrot.slane %v1202, 2
      %v1318 = vsel %vm1270, %v1316, %v1317
      %v1319 = vrot.slane %v1203, 2
      %v1320 = vsel %vm1270, %v1317, %v1319
      %v1321 = vrot.slane %v1204, 2
      %v1322 = vrot.slane %v1205, 2
      %v1323 = vsel %vm1270, %v1321, %v1322
      %v1324 = vrot.slane %v1206, 2
      %v1325 = vsel %vm1270, %v1322, %v1324
      %v1326 = vrot.slane %v1207, 2
      %v1327 = vrot.slane %v1208, 2
      %v1328 = vsel %vm1270, %v1326, %v1327
      %v1329 = vrot.slane %v1209, 2
      %v1330 = vsel %vm1270, %v1327, %v1329
      %v1331 = vrot.slane %v1210, 2
      %v1332 = vrot.slane %v1211, 2
      %v1333 = vsel %vm1270, %v1331, %v1332
      %v1334 = vrot.slane %v1212, 2
      %v1335 = vsel %vm1270, %v1332, %v1334
      %v1336 = vrot.slane %v1213, 2
      %v1337 = vrot.slane %v1214, 2
      %v1338 = vsel %vm1270, %v1336, %v1337
      %v1339 = vrot.slane %v1215, 2
      %v1340 = vsel %vm1270, %v1337, %v1339
      %v1341 = vrot.slane %v1216, 2
      %v1342 = vrot.slane %v1217, 2
      %v1343 = vsel %vm1270, %v1341, %v1342
      %v1344 = vrot.slane %v1218, 2
      %v1345 = vsel %vm1270, %v1342, %v1344
      %v1346 = vrot.slane %v1219, 2
      %v1347 = vrot.slane %v1220, 2
      %v1348 = vsel %vm1270, %v1346, %v1347
      %v1349 = vrot.slane %v1221, 2
      %v1350 = vsel %vm1270, %v1347, %v1349
      %v1383 = vadd.f32 %v1138, %v1273
      %v1384 = vadd.f32 %v1139, %v1275
      %v1385 = vadd.f32 %v1140, %v1278
      %v1386 = vadd.f32 %v1141, %v1280
      %v1387 = vadd.f32 %v1142, %v1283
      %v1388 = vadd.f32 %v1143, %v1285
      %v1389 = vadd.f32 %v1144, %v1288
      %v1390 = vadd.f32 %v1145, %v1290
      %v1391 = vadd.f32 %v1146, %v1293
      %v1392 = vadd.f32 %v1147, %v1295
      %v1393 = vadd.f32 %v1148, %v1298
      %v1394 = vadd.f32 %v1149, %v1300
      %v1395 = vadd.f32 %v1150, %v1303
      %v1396 = vadd.f32 %v1151, %v1305
      %v1397 = vadd.f32 %v1152, %v1308
      %v1398 = vadd.f32 %v1153, %v1310
      %v1399 = vadd.f32 %v1154, %v1313
      %v1400 = vadd.f32 %v1155, %v1315
      %v1401 = vadd.f32 %v1156, %v1318
      %v1402 = vadd.f32 %v1157, %v1320
      %v1403 = vadd.f32 %v1158, %v1323
      %v1404 = vadd.f32 %v1159, %v1325
      %v1405 = vadd.f32 %v1160, %v1328
      %v1406 = vadd.f32 %v1161, %v1330
      %v1407 = vadd.f32 %v1162, %v1333
      %v1408 = vadd.f32 %v1163, %v1335
      %v1409 = vadd.f32 %v1164, %v1338
      %v1410 = vadd.f32 %v1165, %v1340
      %v1411 = vadd.f32 %v1166, %v1343
      %v1412 = vadd.f32 %v1167, %v1345
      %v1413 = vadd.f32 %v1168, %v1348
      %v1414 = vadd.f32 %v1169, %v1350
      %v1415 = vlaneseq
      %v1416 = vshrl.u32 %v1415, 7
      %v1417 = vsub.s32 0, %v1416
      %v1418 = vrot.slane %v887, %v1417
      %v1419 = vmul.f32 %v835, %v1418
      %v1420 = vmul.f32 %v836, %v1418
      %v1421 = vmul.f32 %v838, %v1418
      %v1422 = vmul.f32 %v839, %v1418
      %v1423 = vmul.f32 %v841, %v1418
      %v1424 = vmul.f32 %v842, %v1418
      %v1425 = vmul.f32 %v844, %v1418
      %v1426 = vmul.f32 %v845, %v1418
      %v1427 = vmul.f32 %v847, %v1418
      %v1428 = vmul.f32 %v848, %v1418
      %v1429 = vmul.f32 %v850, %v1418
      %v1430 = vmul.f32 %v851, %v1418
      %v1431 = vmul.f32 %v853, %v1418
      %v1432 = vmul.f32 %v854, %v1418
      %v1433 = vmul.f32 %v856, %v1418
      %v1434 = vmul.f32 %v857, %v1418
      %v1435 = vmul.f32 %v859, %v1418
      %v1436 = vmul.f32 %v860, %v1418
      %v1437 = vmul.f32 %v862, %v1418
      %v1438 = vmul.f32 %v863, %v1418
      %v1439 = vmul.f32 %v865, %v1418
      %v1440 = vmul.f32 %v866, %v1418
      %v1441 = vmul.f32 %v868, %v1418
      %v1442 = vmul.f32 %v869, %v1418
      %v1443 = vmul.f32 %v871, %v1418
      %v1444 = vmul.f32 %v872, %v1418
      %v1445 = vmul.f32 %v874, %v1418
      %v1446 = vmul.f32 %v875, %v1418
      %v1447 = vmul.f32 %v877, %v1418
      %v1448 = vmul.f32 %v878, %v1418
      %v1449 = vmul.f32 %v880, %v1418
      %v1450 = vmul.f32 %v881, %v1418
      %v1451 = vadd.f32 %v1383, %v1419
      %v1452 = vadd.f32 %v1384, %v1420
      %v1453 = vadd.f32 %v1385, %v1421
      %v1454 = vadd.f32 %v1386, %v1422
      %v1455 = vadd.f32 %v1387, %v1423
      %v1456 = vadd.f32 %v1388, %v1424
      %v1457 = vadd.f32 %v1389, %v1425
      %v1458 = vadd.f32 %v1390, %v1426
      %v1459 = vadd.f32 %v1391, %v1427
      %v1460 = vadd.f32 %v1392, %v1428
      %v1461 = vadd.f32 %v1393, %v1429
      %v1462 = vadd.f32 %v1394, %v1430
      %v1463 = vadd.f32 %v1395, %v1431
      %v1464 = vadd.f32 %v1396, %v1432
      %v1465 = vadd.f32 %v1397, %v1433
      %v1466 = vadd.f32 %v1398, %v1434
      %v1467 = vadd.f32 %v1399, %v1435
      %v1468 = vadd.f32 %v1400, %v1436
      %v1469 = vadd.f32 %v1401, %v1437
      %v1470 = vadd.f32 %v1402, %v1438
      %v1471 = vadd.f32 %v1403, %v1439
      %v1472 = vadd.f32 %v1404, %v1440
      %v1473 = vadd.f32 %v1405, %v1441
      %v1474 = vadd.f32 %v1406, %v1442
      %v1475 = vadd.f32 %v1407, %v1443
      %v1476 = vadd.f32 %v1408, %v1444
      %v1477 = vadd.f32 %v1409, %v1445
      %v1478 = vadd.f32 %v1410, %v1446
      %v1479 = vadd.f32 %v1411, %v1447
      %v1480 = vadd.f32 %v1412, %v1448
      %v1481 = vadd.f32 %v1413, %v1449
      %v1482 = vadd.f32 %v1414, %v1450
      %v1483 = vlaneseq
      %v1484 = vshrl.u32 %v1483, 7
      %v1485 = vsub.s32 1, %v1484
      %v1486 = vrot.slane %v887, %v1485
      %v1487 = vmul.f32 %v835, %v1486
      %v1488 = vmul.f32 %v836, %v1486
      %v1489 = vmul.f32 %v837, %v1486
      %v1490 = vmul.f32 %v838, %v1486
      %v1491 = vmul.f32 %v839, %v1486
      %v1492 = vmul.f32 %v840, %v1486
      %v1493 = vmul.f32 %v841, %v1486
      %v1494 = vmul.f32 %v842, %v1486
      %v1495 = vmul.f32 %v843, %v1486
      %v1496 = vmul.f32 %v844, %v1486
      %v1497 = vmul.f32 %v845, %v1486
      %v1498 = vmul.f32 %v846, %v1486
      %v1499 = vmul.f32 %v847, %v1486
      %v1500 = vmul.f32 %v848, %v1486
      %v1501 = vmul.f32 %v849, %v1486
      %v1502 = vmul.f32 %v850, %v1486
      %v1503 = vmul.f32 %v851, %v1486
      %v1504 = vmul.f32 %v852, %v1486
      %v1505 = vmul.f32 %v853, %v1486
      %v1506 = vmul.f32 %v854, %v1486
      %v1507 = vmul.f32 %v855, %v1486
      %v1508 = vmul.f32 %v856, %v1486
      %v1509 = vmul.f32 %v857, %v1486
      %v1510 = vmul.f32 %v858, %v1486
      %v1511 = vmul.f32 %v859, %v1486
      %v1512 = vmul.f32 %v860, %v1486
      %v1513 = vmul.f32 %v861, %v1486
      %v1514 = vmul.f32 %v862, %v1486
      %v1515 = vmul.f32 %v863, %v1486
      %v1516 = vmul.f32 %v864, %v1486
      %v1517 = vmul.f32 %v865, %v1486
      %v1518 = vmul.f32 %v866, %v1486
      %v1519 = vmul.f32 %v867, %v1486
      %v1520 = vmul.f32 %v868, %v1486
      %v1521 = vmul.f32 %v869, %v1486
      %v1522 = vmul.f32 %v870, %v1486
      %v1523 = vmul.f32 %v871, %v1486
      %v1524 = vmul.f32 %v872, %v1486
      %v1525 = vmul.f32 %v873, %v1486
      %v1526 = vmul.f32 %v874, %v1486
      %v1527 = vmul.f32 %v875, %v1486
      %v1528 = vmul.f32 %v876, %v1486
      %v1529 = vmul.f32 %v877, %v1486
      %v1530 = vmul.f32 %v878, %v1486
      %v1531 = vmul.f32 %v879, %v1486
      %v1532 = vmul.f32 %v880, %v1486
      %v1533 = vmul.f32 %v881, %v1486
      %v1534 = vmul.f32 %v882, %v1486
      %v1583 = vrot.slane %v1487, 1
      %v1584 = vrot.slane %v1488, 1
      %v1585 = vsel %vm1025, %v1583, %v1584
      %v1586 = vrot.slane %v1489, 1
      %v1587 = vsel %vm1025, %v1584, %v1586
      %v1588 = vrot.slane %v1490, 1
      %v1589 = vrot.slane %v1491, 1
      %v1590 = vsel %vm1025, %v1588, %v1589
      %v1591 = vrot.slane %v1492, 1
      %v1592 = vsel %vm1025, %v1589, %v1591
      %v1593 = vrot.slane %v1493, 1
      %v1594 = vrot.slane %v1494, 1
      %v1595 = vsel %vm1025, %v1593, %v1594
      %v1596 = vrot.slane %v1495, 1
      %v1597 = vsel %vm1025, %v1594, %v1596
      %v1598 = vrot.slane %v1496, 1
      %v1599 = vrot.slane %v1497, 1
      %v1600 = vsel %vm1025, %v1598, %v1599
      %v1601 = vrot.slane %v1498, 1
      %v1602 = vsel %vm1025, %v1599, %v1601
      %v1603 = vrot.slane %v1499, 1
      %v1604 = vrot.slane %v1500, 1
      %v1605 = vsel %vm1025, %v1603, %v1604
      %v1606 = vrot.slane %v1501, 1
      %v1607 = vsel %vm1025, %v1604, %v1606
      %v1608 = vrot.slane %v1502, 1
      %v1609 = vrot.slane %v1503, 1
      %v1610 = vsel %vm1025, %v1608, %v1609
      %v1611 = vrot.slane %v1504, 1
      %v1612 = vsel %vm1025, %v1609, %v1611
      %v1613 = vrot.slane %v1505, 1
      %v1614 = vrot.slane %v1506, 1
      %v1615 = vsel %vm1025, %v1613, %v1614
      %v1616 = vrot.slane %v1507, 1
      %v1617 = vsel %vm1025, %v1614, %v1616
      %v1618 = vrot.slane %v1508, 1
      %v1619 = vrot.slane %v1509, 1
      %v1620 = vsel %vm1025, %v1618, %v1619
      %v1621 = vrot.slane %v1510, 1
      %v1622 = vsel %vm1025, %v1619, %v1621
      %v1623 = vrot.slane %v1511, 1
      %v1624 = vrot.slane %v1512, 1
      %v1625 = vsel %vm1025, %v1623, %v1624
      %v1626 = vrot.slane %v1513, 1
      %v1627 = vsel %vm1025, %v1624, %v1626
      %v1628 = vrot.slane %v1514, 1
      %v1629 = vrot.slane %v1515, 1
      %v1630 = vsel %vm1025, %v1628, %v1629
      %v1631 = vrot.slane %v1516, 1
      %v1632 = vsel %vm1025, %v1629, %v1631
      %v1633 = vrot.slane %v1517, 1
      %v1634 = vrot.slane %v1518, 1
      %v1635 = vsel %vm1025, %v1633, %v1634
      %v1636 = vrot.slane %v1519, 1
      %v1637 = vsel %vm1025, %v1634, %v1636
      %v1638 = vrot.slane %v1520, 1
      %v1639 = vrot.slane %v1521, 1
      %v1640 = vsel %vm1025, %v1638, %v1639
      %v1641 = vrot.slane %v1522, 1
      %v1642 = vsel %vm1025, %v1639, %v1641
      %v1643 = vrot.slane %v1523, 1
      %v1644 = vrot.slane %v1524, 1
      %v1645 = vsel %vm1025, %v1643, %v1644
      %v1646 = vrot.slane %v1525, 1
      %v1647 = vsel %vm1025, %v1644, %v1646
      %v1648 = vrot.slane %v1526, 1
      %v1649 = vrot.slane %v1527, 1
      %v1650 = vsel %vm1025, %v1648, %v1649
      %v1651 = vrot.slane %v1528, 1
      %v1652 = vsel %vm1025, %v1649, %v1651
      %v1653 = vrot.slane %v1529, 1
      %v1654 = vrot.slane %v1530, 1
      %v1655 = vsel %vm1025, %v1653, %v1654
      %v1656 = vrot.slane %v1531, 1
      %v1657 = vsel %vm1025, %v1654, %v1656
      %v1658 = vrot.slane %v1532, 1
      %v1659 = vrot.slane %v1533, 1
      %v1660 = vsel %vm1025, %v1658, %v1659
      %v1661 = vrot.slane %v1534, 1
      %v1662 = vsel %vm1025, %v1659, %v1661
      %v1695 = vadd.f32 %v1451, %v1585
      %v1696 = vadd.f32 %v1452, %v1587
      %v1697 = vadd.f32 %v1453, %v1590
      %v1698 = vadd.f32 %v1454, %v1592
      %v1699 = vadd.f32 %v1455, %v1595
      %v1700 = vadd.f32 %v1456, %v1597
      %v1701 = vadd.f32 %v1457, %v1600
      %v1702 = vadd.f32 %v1458, %v1602
      %v1703 = vadd.f32 %v1459, %v1605
      %v1704 = vadd.f32 %v1460, %v1607
      %v1705 = vadd.f32 %v1461, %v1610
      %v1706 = vadd.f32 %v1462, %v1612
      %v1707 = vadd.f32 %v1463, %v1615
      %v1708 = vadd.f32 %v1464, %v1617
      %v1709 = vadd.f32 %v1465, %v1620
      %v1710 = vadd.f32 %v1466, %v1622
      %v1711 = vadd.f32 %v1467, %v1625
      %v1712 = vadd.f32 %v1468, %v1627
      %v1713 = vadd.f32 %v1469, %v1630
      %v1714 = vadd.f32 %v1470, %v1632
      %v1715 = vadd.f32 %v1471, %v1635
      %v1716 = vadd.f32 %v1472, %v1637
      %v1717 = vadd.f32 %v1473, %v1640
      %v1718 = vadd.f32 %v1474, %v1642
      %v1719 = vadd.f32 %v1475, %v1645
      %v1720 = vadd.f32 %v1476, %v1647
      %v1721 = vadd.f32 %v1477, %v1650
      %v1722 = vadd.f32 %v1478, %v1652
      %v1723 = vadd.f32 %v1479, %v1655
      %v1724 = vadd.f32 %v1480, %v1657
      %v1725 = vadd.f32 %v1481, %v1660
      %v1726 = vadd.f32 %v1482, %v1662
      %v1727 = vlaneseq
      %v1728 = vshrl.u32 %v1727, 7
      %v1729 = vsub.s32 2, %v1728
      %v1730 = vrot.slane %v887, %v1729
      %v1731 = vmul.f32 %v835, %v1730
      %v1732 = vmul.f32 %v836, %v1730
      %v1733 = vmul.f32 %v837, %v1730
      %v1734 = vmul.f32 %v838, %v1730
      %v1735 = vmul.f32 %v839, %v1730
      %v1736 = vmul.f32 %v840, %v1730
      %v1737 = vmul.f32 %v841, %v1730
      %v1738 = vmul.f32 %v842, %v1730
      %v1739 = vmul.f32 %v843, %v1730
      %v1740 = vmul.f32 %v844, %v1730
      %v1741 = vmul.f32 %v845, %v1730
      %v1742 = vmul.f32 %v846, %v1730
      %v1743 = vmul.f32 %v847, %v1730
      %v1744 = vmul.f32 %v848, %v1730
      %v1745 = vmul.f32 %v849, %v1730
      %v1746 = vmul.f32 %v850, %v1730
      %v1747 = vmul.f32 %v851, %v1730
      %v1748 = vmul.f32 %v852, %v1730
      %v1749 = vmul.f32 %v853, %v1730
      %v1750 = vmul.f32 %v854, %v1730
      %v1751 = vmul.f32 %v855, %v1730
      %v1752 = vmul.f32 %v856, %v1730
      %v1753 = vmul.f32 %v857, %v1730
      %v1754 = vmul.f32 %v858, %v1730
      %v1755 = vmul.f32 %v859, %v1730
      %v1756 = vmul.f32 %v860, %v1730
      %v1757 = vmul.f32 %v861, %v1730
      %v1758 = vmul.f32 %v862, %v1730
      %v1759 = vmul.f32 %v863, %v1730
      %v1760 = vmul.f32 %v864, %v1730
      %v1761 = vmul.f32 %v865, %v1730
      %v1762 = vmul.f32 %v866, %v1730
      %v1763 = vmul.f32 %v867, %v1730
      %v1764 = vmul.f32 %v868, %v1730
      %v1765 = vmul.f32 %v869, %v1730
      %v1766 = vmul.f32 %v870, %v1730
      %v1767 = vmul.f32 %v871, %v1730
      %v1768 = vmul.f32 %v872, %v1730
      %v1769 = vmul.f32 %v873, %v1730
      %v1770 = vmul.f32 %v874, %v1730
      %v1771 = vmul.f32 %v875, %v1730
      %v1772 = vmul.f32 %v876, %v1730
      %v1773 = vmul.f32 %v877, %v1730
      %v1774 = vmul.f32 %v878, %v1730
      %v1775 = vmul.f32 %v879, %v1730
      %v1776 = vmul.f32 %v880, %v1730
      %v1777 = vmul.f32 %v881, %v1730
      %v1778 = vmul.f32 %v882, %v1730
      %v1827 = vrot.slane %v1731, 2
      %v1828 = vrot.slane %v1732, 2
      %v1829 = vsel %vm1270, %v1827, %v1828
      %v1830 = vrot.slane %v1733, 2
      %v1831 = vsel %vm1270, %v1828, %v1830
      %v1832 = vrot.slane %v1734, 2
      %v1833 = vrot.slane %v1735, 2
      %v1834 = vsel %vm1270, %v1832, %v1833
      %v1835 = vrot.slane %v1736, 2
      %v1836 = vsel %vm1270, %v1833, %v1835
      %v1837 = vrot.slane %v1737, 2
      %v1838 = vrot.slane %v1738, 2
      %v1839 = vsel %vm1270, %v1837, %v1838
      %v1840 = vrot.slane %v1739, 2
      %v1841 = vsel %vm1270, %v1838, %v1840
      %v1842 = vrot.slane %v1740, 2
      %v1843 = vrot.slane %v1741, 2
      %v1844 = vsel %vm1270, %v1842, %v1843
      %v1845 = vrot.slane %v1742, 2
      %v1846 = vsel %vm1270, %v1843, %v1845
      %v1847 = vrot.slane %v1743, 2
      %v1848 = vrot.slane %v1744, 2
      %v1849 = vsel %vm1270, %v1847, %v1848
      %v1850 = vrot.slane %v1745, 2
      %v1851 = vsel %vm1270, %v1848, %v1850
      %v1852 = vrot.slane %v1746, 2
      %v1853 = vrot.slane %v1747, 2
      %v1854 = vsel %vm1270, %v1852, %v1853
      %v1855 = vrot.slane %v1748, 2
      %v1856 = vsel %vm1270, %v1853, %v1855
      %v1857 = vrot.slane %v1749, 2
      %v1858 = vrot.slane %v1750, 2
      %v1859 = vsel %vm1270, %v1857, %v1858
      %v1860 = vrot.slane %v1751, 2
      %v1861 = vsel %vm1270, %v1858, %v1860
      %v1862 = vrot.slane %v1752, 2
      %v1863 = vrot.slane %v1753, 2
      %v1864 = vsel %vm1270, %v1862, %v1863
      %v1865 = vrot.slane %v1754, 2
      %v1866 = vsel %vm1270, %v1863, %v1865
      %v1867 = vrot.slane %v1755, 2
      %v1868 = vrot.slane %v1756, 2
      %v1869 = vsel %vm1270, %v1867, %v1868
      %v1870 = vrot.slane %v1757, 2
      %v1871 = vsel %vm1270, %v1868, %v1870
      %v1872 = vrot.slane %v1758, 2
      %v1873 = vrot.slane %v1759, 2
      %v1874 = vsel %vm1270, %v1872, %v1873
      %v1875 = vrot.slane %v1760, 2
      %v1876 = vsel %vm1270, %v1873, %v1875
      %v1877 = vrot.slane %v1761, 2
      %v1878 = vrot.slane %v1762, 2
      %v1879 = vsel %vm1270, %v1877, %v1878
      %v1880 = vrot.slane %v1763, 2
      %v1881 = vsel %vm1270, %v1878, %v1880
      %v1882 = vrot.slane %v1764, 2
      %v1883 = vrot.slane %v1765, 2
      %v1884 = vsel %vm1270, %v1882, %v1883
      %v1885 = vrot.slane %v1766, 2
      %v1886 = vsel %vm1270, %v1883, %v1885
      %v1887 = vrot.slane %v1767, 2
      %v1888 = vrot.slane %v1768, 2
      %v1889 = vsel %vm1270, %v1887, %v1888
      %v1890 = vrot.slane %v1769, 2
      %v1891 = vsel %vm1270, %v1888, %v1890
      %v1892 = vrot.slane %v1770, 2
      %v1893 = vrot.slane %v1771, 2
      %v1894 = vsel %vm1270, %v1892, %v1893
      %v1895 = vrot.slane %v1772, 2
      %v1896 = vsel %vm1270, %v1893, %v1895
      %v1897 = vrot.slane %v1773, 2
      %v1898 = vrot.slane %v1774, 2
      %v1899 = vsel %vm1270, %v1897, %v1898
      %v1900 = vrot.slane %v1775, 2
      %v1901 = vsel %vm1270, %v1898, %v1900
      %v1902 = vrot.slane %v1776, 2
      %v1903 = vrot.slane %v1777, 2
      %v1904 = vsel %vm1270, %v1902, %v1903
      %v1905 = vrot.slane %v1778, 2
      %v1906 = vsel %vm1270, %v1903, %v1905
      %v1939 = vadd.f32 %v1695, %v1829
      %v1940 = vadd.f32 %v1696, %v1831
      %v1941 = vadd.f32 %v1697, %v1834
      %v1942 = vadd.f32 %v1698, %v1836
      %v1943 = vadd.f32 %v1699, %v1839
      %v1944 = vadd.f32 %v1700, %v1841
      %v1945 = vadd.f32 %v1701, %v1844
      %v1946 = vadd.f32 %v1702, %v1846
      %v1947 = vadd.f32 %v1703, %v1849
      %v1948 = vadd.f32 %v1704, %v1851
      %v1949 = vadd.f32 %v1705, %v1854
      %v1950 = vadd.f32 %v1706, %v1856
      %v1951 = vadd.f32 %v1707, %v1859
      %v1952 = vadd.f32 %v1708, %v1861
      %v1953 = vadd.f32 %v1709, %v1864
      %v1954 = vadd.f32 %v1710, %v1866
      %v1955 = vadd.f32 %v1711, %v1869
      %v1956 = vadd.f32 %v1712, %v1871
      %v1957 = vadd.f32 %v1713, %v1874
      %v1958 = vadd.f32 %v1714, %v1876
      %v1959 = vadd.f32 %v1715, %v1879
      %v1960 = vadd.f32 %v1716, %v1881
      %v1961 = vadd.f32 %v1717, %v1884
      %v1962 = vadd.f32 %v1718, %v1886
      %v1963 = vadd.f32 %v1719, %v1889
      %v1964 = vadd.f32 %v1720, %v1891
      %v1965 = vadd.f32 %v1721, %v1894
      %v1966 = vadd.f32 %v1722, %v1896
      %v1967 = vadd.f32 %v1723, %v1899
      %v1968 = vadd.f32 %v1724, %v1901
      %v1969 = vadd.f32 %v1725, %v1904
      %v1970 = vadd.f32 %v1726, %v1906
      %v1971 = vlaneseq
      %v1972 = vshrl.u32 %v1971, 7
      %v1973 = vsub.s32 0, %v1972
      %v1974 = vrot.slane %v888, %v1973
      %v1975 = vmul.f32 %v838, %v1974
      %v1976 = vmul.f32 %v839, %v1974
      %v1977 = vmul.f32 %v841, %v1974
      %v1978 = vmul.f32 %v842, %v1974
      %v1979 = vmul.f32 %v844, %v1974
      %v1980 = vmul.f32 %v845, %v1974
      %v1981 = vmul.f32 %v847, %v1974
      %v1982 = vmul.f32 %v848, %v1974
      %v1983 = vmul.f32 %v850, %v1974
      %v1984 = vmul.f32 %v851, %v1974
      %v1985 = vmul.f32 %v853, %v1974
      %v1986 = vmul.f32 %v854, %v1974
      %v1987 = vmul.f32 %v856, %v1974
      %v1988 = vmul.f32 %v857, %v1974
      %v1989 = vmul.f32 %v859, %v1974
      %v1990 = vmul.f32 %v860, %v1974
      %v1991 = vmul.f32 %v862, %v1974
      %v1992 = vmul.f32 %v863, %v1974
      %v1993 = vmul.f32 %v865, %v1974
      %v1994 = vmul.f32 %v866, %v1974
      %v1995 = vmul.f32 %v868, %v1974
      %v1996 = vmul.f32 %v869, %v1974
      %v1997 = vmul.f32 %v871, %v1974
      %v1998 = vmul.f32 %v872, %v1974
      %v1999 = vmul.f32 %v874, %v1974
      %v2000 = vmul.f32 %v875, %v1974
      %v2001 = vmul.f32 %v877, %v1974
      %v2002 = vmul.f32 %v878, %v1974
      %v2003 = vmul.f32 %v880, %v1974
      %v2004 = vmul.f32 %v881, %v1974
      %v2005 = vmul.f32 %v883, %v1974
      %v2006 = vmul.f32 %v884, %v1974
      %v2007 = vadd.f32 %v1939, %v1975
      %v2008 = vadd.f32 %v1940, %v1976
      %v2009 = vadd.f32 %v1941, %v1977
      %v2010 = vadd.f32 %v1942, %v1978
      %v2011 = vadd.f32 %v1943, %v1979
      %v2012 = vadd.f32 %v1944, %v1980
      %v2013 = vadd.f32 %v1945, %v1981
      %v2014 = vadd.f32 %v1946, %v1982
      %v2015 = vadd.f32 %v1947, %v1983
      %v2016 = vadd.f32 %v1948, %v1984
      %v2017 = vadd.f32 %v1949, %v1985
      %v2018 = vadd.f32 %v1950, %v1986
      %v2019 = vadd.f32 %v1951, %v1987
      %v2020 = vadd.f32 %v1952, %v1988
      %v2021 = vadd.f32 %v1953, %v1989
      %v2022 = vadd.f32 %v1954, %v1990
      %v2023 = vadd.f32 %v1955, %v1991
      %v2024 = vadd.f32 %v1956, %v1992
      %v2025 = vadd.f32 %v1957, %v1993
      %v2026 = vadd.f32 %v1958, %v1994
      %v2027 = vadd.f32 %v1959, %v1995
      %v2028 = vadd.f32 %v1960, %v1996
      %v2029 = vadd.f32 %v1961, %v1997
      %v2030 = vadd.f32 %v1962, %v1998
      %v2031 = vadd.f32 %v1963, %v1999
      %v2032 = vadd.f32 %v1964, %v2000
      %v2033 = vadd.f32 %v1965, %v2001
      %v2034 = vadd.f32 %v1966, %v2002
      %v2035 = vadd.f32 %v1967, %v2003
      %v2036 = vadd.f32 %v1968, %v2004
      %v2037 = vadd.f32 %v1969, %v2005
      %v2038 = vadd.f32 %v1970, %v2006
      %v2039 = vlaneseq
      %v2040 = vshrl.u32 %v2039, 7
      %v2041 = vsub.s32 1, %v2040
      %v2042 = vrot.slane %v888, %v2041
      %v2043 = vmul.f32 %v838, %v2042
      %v2044 = vmul.f32 %v839, %v2042
      %v2045 = vmul.f32 %v840, %v2042
      %v2046 = vmul.f32 %v841, %v2042
      %v2047 = vmul.f32 %v842, %v2042
      %v2048 = vmul.f32 %v843, %v2042
      %v2049 = vmul.f32 %v844, %v2042
      %v2050 = vmul.f32 %v845, %v2042
      %v2051 = vmul.f32 %v846, %v2042
      %v2052 = vmul.f32 %v847, %v2042
      %v2053 = vmul.f32 %v848, %v2042
      %v2054 = vmul.f32 %v849, %v2042
      %v2055 = vmul.f32 %v850, %v2042
      %v2056 = vmul.f32 %v851, %v2042
      %v2057 = vmul.f32 %v852, %v2042
      %v2058 = vmul.f32 %v853, %v2042
      %v2059 = vmul.f32 %v854, %v2042
      %v2060 = vmul.f32 %v855, %v2042
      %v2061 = vmul.f32 %v856, %v2042
      %v2062 = vmul.f32 %v857, %v2042
      %v2063 = vmul.f32 %v858, %v2042
      %v2064 = vmul.f32 %v859, %v2042
      %v2065 = vmul.f32 %v860, %v2042
      %v2066 = vmul.f32 %v861, %v2042
      %v2067 = vmul.f32 %v862, %v2042
      %v2068 = vmul.f32 %v863, %v2042
      %v2069 = vmul.f32 %v864, %v2042
      %v2070 = vmul.f32 %v865, %v2042
      %v2071 = vmul.f32 %v866, %v2042
      %v2072 = vmul.f32 %v867, %v2042
      %v2073 = vmul.f32 %v868, %v2042
      %v2074 = vmul.f32 %v869, %v2042
      %v2075 = vmul.f32 %v870, %v2042
      %v2076 = vmul.f32 %v871, %v2042
      %v2077 = vmul.f32 %v872, %v2042
      %v2078 = vmul.f32 %v873, %v2042
      %v2079 = vmul.f32 %v874, %v2042
      %v2080 = vmul.f32 %v875, %v2042
      %v2081 = vmul.f32 %v876, %v2042
      %v2082 = vmul.f32 %v877, %v2042
      %v2083 = vmul.f32 %v878, %v2042
      %v2084 = vmul.f32 %v879, %v2042
      %v2085 = vmul.f32 %v880, %v2042
      %v2086 = vmul.f32 %v881, %v2042
      %v2087 = vmul.f32 %v882, %v2042
      %v2088 = vmul.f32 %v883, %v2042
      %v2089 = vmul.f32 %v884, %v2042
      %v2090 = vmul.f32 %v885, %v2042
      %v2139 = vrot.slane %v2043, 1
      %v2140 = vrot.slane %v2044, 1
      %v2141 = vsel %vm1025, %v2139, %v2140
      %v2142 = vrot.slane %v2045, 1
      %v2143 = vsel %vm1025, %v2140, %v2142
      %v2144 = vrot.slane %v2046, 1
      %v2145 = vrot.slane %v2047, 1
      %v2146 = vsel %vm1025, %v2144, %v2145
      %v2147 = vrot.slane %v2048, 1
      %v2148 = vsel %vm1025, %v2145, %v2147
      %v2149 = vrot.slane %v2049, 1
      %v2150 = vrot.slane %v2050, 1
      %v2151 = vsel %vm1025, %v2149, %v2150
      %v2152 = vrot.slane %v2051, 1
      %v2153 = vsel %vm1025, %v2150, %v2152
      %v2154 = vrot.slane %v2052, 1
      %v2155 = vrot.slane %v2053, 1
      %v2156 = vsel %vm1025, %v2154, %v2155
      %v2157 = vrot.slane %v2054, 1
      %v2158 = vsel %vm1025, %v2155, %v2157
      %v2159 = vrot.slane %v2055, 1
      %v2160 = vrot.slane %v2056, 1
      %v2161 = vsel %vm1025, %v2159, %v2160
      %v2162 = vrot.slane %v2057, 1
      %v2163 = vsel %vm1025, %v2160, %v2162
      %v2164 = vrot.slane %v2058, 1
      %v2165 = vrot.slane %v2059, 1
      %v2166 = vsel %vm1025, %v2164, %v2165
      %v2167 = vrot.slane %v2060, 1
      %v2168 = vsel %vm1025, %v2165, %v2167
      %v2169 = vrot.slane %v2061, 1
      %v2170 = vrot.slane %v2062, 1
      %v2171 = vsel %vm1025, %v2169, %v2170
      %v2172 = vrot.slane %v2063, 1
      %v2173 = vsel %vm1025, %v2170, %v2172
      %v2174 = vrot.slane %v2064, 1
      %v2175 = vrot.slane %v2065, 1
      %v2176 = vsel %vm1025, %v2174, %v2175
      %v2177 = vrot.slane %v2066, 1
      %v2178 = vsel %vm1025, %v2175, %v2177
      %v2179 = vrot.slane %v2067, 1
      %v2180 = vrot.slane %v2068, 1
      %v2181 = vsel %vm1025, %v2179, %v2180
      %v2182 = vrot.slane %v2069, 1
      %v2183 = vsel %vm1025, %v2180, %v2182
      %v2184 = vrot.slane %v2070, 1
      %v2185 = vrot.slane %v2071, 1
      %v2186 = vsel %vm1025, %v2184, %v2185
      %v2187 = vrot.slane %v2072, 1
      %v2188 = vsel %vm1025, %v2185, %v2187
      %v2189 = vrot.slane %v2073, 1
      %v2190 = vrot.slane %v2074, 1
      %v2191 = vsel %vm1025, %v2189, %v2190
      %v2192 = vrot.slane %v2075, 1
      %v2193 = vsel %vm1025, %v2190, %v2192
      %v2194 = vrot.slane %v2076, 1
      %v2195 = vrot.slane %v2077, 1
      %v2196 = vsel %vm1025, %v2194, %v2195
      %v2197 = vrot.slane %v2078, 1
      %v2198 = vsel %vm1025, %v2195, %v2197
      %v2199 = vrot.slane %v2079, 1
      %v2200 = vrot.slane %v2080, 1
      %v2201 = vsel %vm1025, %v2199, %v2200
      %v2202 = vrot.slane %v2081, 1
      %v2203 = vsel %vm1025, %v2200, %v2202
      %v2204 = vrot.slane %v2082, 1
      %v2205 = vrot.slane %v2083, 1
      %v2206 = vsel %vm1025, %v2204, %v2205
      %v2207 = vrot.slane %v2084, 1
      %v2208 = vsel %vm1025, %v2205, %v2207
      %v2209 = vrot.slane %v2085, 1
      %v2210 = vrot.slane %v2086, 1
      %v2211 = vsel %vm1025, %v2209, %v2210
      %v2212 = vrot.slane %v2087, 1
      %v2213 = vsel %vm1025, %v2210, %v2212
      %v2214 = vrot.slane %v2088, 1
      %v2215 = vrot.slane %v2089, 1
      %v2216 = vsel %vm1025, %v2214, %v2215
      %v2217 = vrot.slane %v2090, 1
      %v2218 = vsel %vm1025, %v2215, %v2217
      %v2251 = vadd.f32 %v2007, %v2141
      %v2252 = vadd.f32 %v2008, %v2143
      %v2253 = vadd.f32 %v2009, %v2146
      %v2254 = vadd.f32 %v2010, %v2148
      %v2255 = vadd.f32 %v2011, %v2151
      %v2256 = vadd.f32 %v2012, %v2153
      %v2257 = vadd.f32 %v2013, %v2156
      %v2258 = vadd.f32 %v2014, %v2158
      %v2259 = vadd.f32 %v2015, %v2161
      %v2260 = vadd.f32 %v2016, %v2163
      %v2261 = vadd.f32 %v2017, %v2166
      %v2262 = vadd.f32 %v2018, %v2168
      %v2263 = vadd.f32 %v2019, %v2171
      %v2264 = vadd.f32 %v2020, %v2173
      %v2265 = vadd.f32 %v2021, %v2176
      %v2266 = vadd.f32 %v2022, %v2178
      %v2267 = vadd.f32 %v2023, %v2181
      %v2268 = vadd.f32 %v2024, %v2183
      %v2269 = vadd.f32 %v2025, %v2186
      %v2270 = vadd.f32 %v2026, %v2188
      %v2271 = vadd.f32 %v2027, %v2191
      %v2272 = vadd.f32 %v2028, %v2193
      %v2273 = vadd.f32 %v2029, %v2196
      %v2274 = vadd.f32 %v2030, %v2198
      %v2275 = vadd.f32 %v2031, %v2201
      %v2276 = vadd.f32 %v2032, %v2203
      %v2277 = vadd.f32 %v2033, %v2206
      %v2278 = vadd.f32 %v2034, %v2208
      %v2279 = vadd.f32 %v2035, %v2211
      %v2280 = vadd.f32 %v2036, %v2213
      %v2281 = vadd.f32 %v2037, %v2216
      %v2282 = vadd.f32 %v2038, %v2218
      %v2283 = vlaneseq
      %v2284 = vshrl.u32 %v2283, 7
      %v2285 = vsub.s32 2, %v2284
      %v2286 = vrot.slane %v888, %v2285
      %v2287 = vmul.f32 %v838, %v2286
      %v2288 = vmul.f32 %v839, %v2286
      %v2289 = vmul.f32 %v840, %v2286
      %v2290 = vmul.f32 %v841, %v2286
      %v2291 = vmul.f32 %v842, %v2286
      %v2292 = vmul.f32 %v843, %v2286
      %v2293 = vmul.f32 %v844, %v2286
      %v2294 = vmul.f32 %v845, %v2286
      %v2295 = vmul.f32 %v846, %v2286
      %v2296 = vmul.f32 %v847, %v2286
      %v2297 = vmul.f32 %v848, %v2286
      %v2298 = vmul.f32 %v849, %v2286
      %v2299 = vmul.f32 %v850, %v2286
      %v2300 = vmul.f32 %v851, %v2286
      %v2301 = vmul.f32 %v852, %v2286
      %v2302 = vmul.f32 %v853, %v2286
      %v2303 = vmul.f32 %v854, %v2286
      %v2304 = vmul.f32 %v855, %v2286
      %v2305 = vmul.f32 %v856, %v2286
      %v2306 = vmul.f32 %v857, %v2286
      %v2307 = vmul.f32 %v858, %v2286
      %v2308 = vmul.f32 %v859, %v2286
      %v2309 = vmul.f32 %v860, %v2286
      %v2310 = vmul.f32 %v861, %v2286
      %v2311 = vmul.f32 %v862, %v2286
      %v2312 = vmul.f32 %v863, %v2286
      %v2313 = vmul.f32 %v864, %v2286
      %v2314 = vmul.f32 %v865, %v2286
      %v2315 = vmul.f32 %v866, %v2286
      %v2316 = vmul.f32 %v867, %v2286
      %v2317 = vmul.f32 %v868, %v2286
      %v2318 = vmul.f32 %v869, %v2286
      %v2319 = vmul.f32 %v870, %v2286
      %v2320 = vmul.f32 %v871, %v2286
      %v2321 = vmul.f32 %v872, %v2286
      %v2322 = vmul.f32 %v873, %v2286
      %v2323 = vmul.f32 %v874, %v2286
      %v2324 = vmul.f32 %v875, %v2286
      %v2325 = vmul.f32 %v876, %v2286
      %v2326 = vmul.f32 %v877, %v2286
      %v2327 = vmul.f32 %v878, %v2286
      %v2328 = vmul.f32 %v879, %v2286
      %v2329 = vmul.f32 %v880, %v2286
      %v2330 = vmul.f32 %v881, %v2286
      %v2331 = vmul.f32 %v882, %v2286
      %v2332 = vmul.f32 %v883, %v2286
      %v2333 = vmul.f32 %v884, %v2286
      %v2334 = vmul.f32 %v885, %v2286
      %v2383 = vrot.slane %v2287, 2
      %v2384 = vrot.slane %v2288, 2
      %v2385 = vsel %vm1270, %v2383, %v2384
      %v2386 = vrot.slane %v2289, 2
      %v2387 = vsel %vm1270, %v2384, %v2386
      %v2388 = vrot.slane %v2290, 2
      %v2389 = vrot.slane %v2291, 2
      %v2390 = vsel %vm1270, %v2388, %v2389
      %v2391 = vrot.slane %v2292, 2
      %v2392 = vsel %vm1270, %v2389, %v2391
      %v2393 = vrot.slane %v2293, 2
      %v2394 = vrot.slane %v2294, 2
      %v2395 = vsel %vm1270, %v2393, %v2394
      %v2396 = vrot.slane %v2295, 2
      %v2397 = vsel %vm1270, %v2394, %v2396
      %v2398 = vrot.slane %v2296, 2
      %v2399 = vrot.slane %v2297, 2
      %v2400 = vsel %vm1270, %v2398, %v2399
      %v2401 = vrot.slane %v2298, 2
      %v2402 = vsel %vm1270, %v2399, %v2401
      %v2403 = vrot.slane %v2299, 2
      %v2404 = vrot.slane %v2300, 2
      %v2405 = vsel %vm1270, %v2403, %v2404
      %v2406 = vrot.slane %v2301, 2
      %v2407 = vsel %vm1270, %v2404, %v2406
      %v2408 = vrot.slane %v2302, 2
      %v2409 = vrot.slane %v2303, 2
      %v2410 = vsel %vm1270, %v2408, %v2409
      %v2411 = vrot.slane %v2304, 2
      %v2412 = vsel %vm1270, %v2409, %v2411
      %v2413 = vrot.slane %v2305, 2
      %v2414 = vrot.slane %v2306, 2
      %v2415 = vsel %vm1270, %v2413, %v2414
      %v2416 = vrot.slane %v2307, 2
      %v2417 = vsel %vm1270, %v2414, %v2416
      %v2418 = vrot.slane %v2308, 2
      %v2419 = vrot.slane %v2309, 2
      %v2420 = vsel %vm1270, %v2418, %v2419
      %v2421 = vrot.slane %v2310, 2
      %v2422 = vsel %vm1270, %v2419, %v2421
      %v2423 = vrot.slane %v2311, 2
      %v2424 = vrot.slane %v2312, 2
      %v2425 = vsel %vm1270, %v2423, %v2424
      %v2426 = vrot.slane %v2313, 2
      %v2427 = vsel %vm1270, %v2424, %v2426
      %v2428 = vrot.slane %v2314, 2
      %v2429 = vrot.slane %v2315, 2
      %v2430 = vsel %vm1270, %v2428, %v2429
      %v2431 = vrot.slane %v2316, 2
      %v2432 = vsel %vm1270, %v2429, %v2431
      %v2433 = vrot.slane %v2317, 2
      %v2434 = vrot.slane %v2318, 2
      %v2435 = vsel %vm1270, %v2433, %v2434
      %v2436 = vrot.slane %v2319, 2
      %v2437 = vsel %vm1270, %v2434, %v2436
      %v2438 = vrot.slane %v2320, 2
      %v2439 = vrot.slane %v2321, 2
      %v2440 = vsel %vm1270, %v2438, %v2439
      %v2441 = vrot.slane %v2322, 2
      %v2442 = vsel %vm1270, %v2439, %v2441
      %v2443 = vrot.slane %v2323, 2
      %v2444 = vrot.slane %v2324, 2
      %v2445 = vsel %vm1270, %v2443, %v2444
      %v2446 = vrot.slane %v2325, 2
      %v2447 = vsel %vm1270, %v2444, %v2446
      %v2448 = vrot.slane %v2326, 2
      %v2449 = vrot.slane %v2327, 2
      %v2450 = vsel %vm1270, %v2448, %v2449
      %v2451 = vrot.slane %v2328, 2
      %v2452 = vsel %vm1270, %v2449, %v2451
      %v2453 = vrot.slane %v2329, 2
      %v2454 = vrot.slane %v2330, 2
      %v2455 = vsel %vm1270, %v2453, %v2454
      %v2456 = vrot.slane %v2331, 2
      %v2457 = vsel %vm1270, %v2454, %v2456
      %v2458 = vrot.slane %v2332, 2
      %v2459 = vrot.slane %v2333, 2
      %v2460 = vsel %vm1270, %v2458, %v2459
      %v2461 = vrot.slane %v2334, 2
      %v2462 = vsel %vm1270, %v2459, %v2461
      %v2495 = vadd.f32 %v2251, %v2385
      %v2496 = vadd.f32 %v2252, %v2387
      %v2497 = vadd.f32 %v2253, %v2390
      %v2498 = vadd.f32 %v2254, %v2392
      %v2499 = vadd.f32 %v2255, %v2395
      %v2500 = vadd.f32 %v2256, %v2397
      %v2501 = vadd.f32 %v2257, %v2400
      %v2502 = vadd.f32 %v2258, %v2402
      %v2503 = vadd.f32 %v2259, %v2405
      %v2504 = vadd.f32 %v2260, %v2407
      %v2505 = vadd.f32 %v2261, %v2410
      %v2506 = vadd.f32 %v2262, %v2412
      %v2507 = vadd.f32 %v2263, %v2415
      %v2508 = vadd.f32 %v2264, %v2417
      %v2509 = vadd.f32 %v2265, %v2420
      %v2510 = vadd.f32 %v2266, %v2422
      %v2511 = vadd.f32 %v2267, %v2425
      %v2512 = vadd.f32 %v2268, %v2427
      %v2513 = vadd.f32 %v2269, %v2430
      %v2514 = vadd.f32 %v2270, %v2432
      %v2515 = vadd.f32 %v2271, %v2435
      %v2516 = vadd.f32 %v2272, %v2437
      %v2517 = vadd.f32 %v2273, %v2440
      %v2518 = vadd.f32 %v2274, %v2442
      %v2519 = vadd.f32 %v2275, %v2445
      %v2520 = vadd.f32 %v2276, %v2447
      %v2521 = vadd.f32 %v2277, %v2450
      %v2522 = vadd.f32 %v2278, %v2452
      %v2523 = vadd.f32 %v2279, %v2455
      %v2524 = vadd.f32 %v2280, %v2457
      %v2525 = vadd.f32 %v2281, %v2460
      %v2526 = vadd.f32 %v2282, %v2462
      %v2527 = vld [vmem:[%s5] sm:$0x1]
      %v2529 = vlaneseq
      %v2530 = vshrl.u32 %v2529, 7
      %v2531 = vsub.s32 0, %v2530
      %v2532 = vrot.slane %v2527, %v2531
      %v2534 = vmul.f32 %v2495, %v2532
      %v2535 = vmul.f32 %v2496, %v2532
      %v2536 = vmul.f32 %v2497, %v2532
      %v2537 = vmul.f32 %v2498, %v2532
      %v2538 = vmul.f32 %v2499, %v2532
      %v2539 = vmul.f32 %v2500, %v2532
      %v2540 = vmul.f32 %v2501, %v2532
      %v2541 = vmul.f32 %v2502, %v2532
      %v2542 = vmul.f32 %v2503, %v2532
      %v2543 = vmul.f32 %v2504, %v2532
      %v2544 = vmul.f32 %v2505, %v2532
      %v2545 = vmul.f32 %v2506, %v2532
      %v2546 = vmul.f32 %v2507, %v2532
      %v2547 = vmul.f32 %v2508, %v2532
      %v2548 = vmul.f32 %v2509, %v2532
      %v2549 = vmul.f32 %v2510, %v2532
      %v2550 = vmul.f32 %v2511, %v2532
      %v2551 = vmul.f32 %v2512, %v2532
      %v2552 = vmul.f32 %v2513, %v2532
      %v2553 = vmul.f32 %v2514, %v2532
      %v2554 = vmul.f32 %v2515, %v2532
      %v2555 = vmul.f32 %v2516, %v2532
      %v2556 = vmul.f32 %v2517, %v2532
      %v2557 = vmul.f32 %v2518, %v2532
      %v2558 = vmul.f32 %v2519, %v2532
      %v2559 = vmul.f32 %v2520, %v2532
      %v2560 = vmul.f32 %v2521, %v2532
      %v2561 = vmul.f32 %v2522, %v2532
      %v2562 = vmul.f32 %v2523, %v2532
      %v2563 = vmul.f32 %v2524, %v2532
      %v2564 = vmul.f32 %v2525, %v2532
      %v2565 = vmul.f32 %v2526, %v2532
      %v2566 = vld [vmem:[%s6] sm:$0x1]
      %v2568 = vlaneseq
      %v2569 = vshrl.u32 %v2568, 7
      %v2570 = vsub.s32 0, %v2569
      %v2571 = vrot.slane %v2566, %v2570
      %v2573 = vadd.f32 %v2534, %v2571
      %v2574 = vadd.f32 %v2535, %v2571
      %v2575 = vadd.f32 %v2536, %v2571
      %v2576 = vadd.f32 %v2537, %v2571
      %v2577 = vadd.f32 %v2538, %v2571
      %v2578 = vadd.f32 %v2539, %v2571
      %v2579 = vadd.f32 %v2540, %v2571
      %v2580 = vadd.f32 %v2541, %v2571
      %v2581 = vadd.f32 %v2542, %v2571
      %v2582 = vadd.f32 %v2543, %v2571
      %v2583 = vadd.f32 %v2544, %v2571
      %v2584 = vadd.f32 %v2545, %v2571
      %v2585 = vadd.f32 %v2546, %v2571
      %v2586 = vadd.f32 %v2547, %v2571
      %v2587 = vadd.f32 %v2548, %v2571
      %v2588 = vadd.f32 %v2549, %v2571
      %v2589 = vadd.f32 %v2550, %v2571
      %v2590 = vadd.f32 %v2551, %v2571
      %v2591 = vadd.f32 %v2552, %v2571
      %v2592 = vadd.f32 %v2553, %v2571
      %v2593 = vadd.f32 %v2554, %v2571
      %v2594 = vadd.f32 %v2555, %v2571
      %v2595 = vadd.f32 %v2556, %v2571
      %v2596 = vadd.f32 %v2557, %v2571
      %v2597 = vadd.f32 %v2558, %v2571
      %v2598 = vadd.f32 %v2559, %v2571
      %v2599 = vadd.f32 %v2560, %v2571
      %v2600 = vadd.f32 %v2561, %v2571
      %v2601 = vadd.f32 %v2562, %v2571
      %v2602 = vadd.f32 %v2563, %v2571
      %v2603 = vadd.f32 %v2564, %v2571
      %v2604 = vadd.f32 %v2565, %v2571
      %v2605 = vmax.f32 %v2573, 0.0
      %v2606 = vmax.f32 %v2574, 0.0
      %v2607 = vmax.f32 %v2575, 0.0
      %v2608 = vmax.f32 %v2576, 0.0
      %v2609 = vmax.f32 %v2577, 0.0
      %v2610 = vmax.f32 %v2578, 0.0
      %v2611 = vmax.f32 %v2579, 0.0
      %v2612 = vmax.f32 %v2580, 0.0
      %v2613 = vmax.f32 %v2581, 0.0
      %v2614 = vmax.f32 %v2582, 0.0
      %v2615 = vmax.f32 %v2583, 0.0
      %v2616 = vmax.f32 %v2584, 0.0
      %v2617 = vmax.f32 %v2585, 0.0
      %v2618 = vmax.f32 %v2586, 0.0
      %v2619 = vmax.f32 %v2587, 0.0
      %v2620 = vmax.f32 %v2588, 0.0
      %v2621 = vmax.f32 %v2589, 0.0
      %v2622 = vmax.f32 %v2590, 0.0
      %v2623 = vmax.f32 %v2591, 0.0
      %v2624 = vmax.f32 %v2592, 0.0
      %v2625 = vmax.f32 %v2593, 0.0
      %v2626 = vmax.f32 %v2594, 0.0
      %v2627 = vmax.f32 %v2595, 0.0
      %v2628 = vmax.f32 %v2596, 0.0
      %v2629 = vmax.f32 %v2597, 0.0
      %v2630 = vmax.f32 %v2598, 0.0
      %v2631 = vmax.f32 %v2599, 0.0
      %v2632 = vmax.f32 %v2600, 0.0
      %v2633 = vmax.f32 %v2601, 0.0
      %v2634 = vmax.f32 %v2602, 0.0
      %v2635 = vmax.f32 %v2603, 0.0
      %v2636 = vmax.f32 %v2604, 0.0
      %v2637 = vmin.f32 %v2605, 6.0
      %v2638 = vmin.f32 %v2606, 6.0
      %v2639 = vmin.f32 %v2607, 6.0
      %v2640 = vmin.f32 %v2608, 6.0
      %v2641 = vmin.f32 %v2609, 6.0
      %v2642 = vmin.f32 %v2610, 6.0
      %v2643 = vmin.f32 %v2611, 6.0
      %v2644 = vmin.f32 %v2612, 6.0
      %v2645 = vmin.f32 %v2613, 6.0
      %v2646 = vmin.f32 %v2614, 6.0
      %v2647 = vmin.f32 %v2615, 6.0
      %v2648 = vmin.f32 %v2616, 6.0
      %v2649 = vmin.f32 %v2617, 6.0
      %v2650 = vmin.f32 %v2618, 6.0
      %v2651 = vmin.f32 %v2619, 6.0
      %v2652 = vmin.f32 %v2620, 6.0
      %v2653 = vmin.f32 %v2621, 6.0
      %v2654 = vmin.f32 %v2622, 6.0
      %v2655 = vmin.f32 %v2623, 6.0
      %v2656 = vmin.f32 %v2624, 6.0
      %v2657 = vmin.f32 %v2625, 6.0
      %v2658 = vmin.f32 %v2626, 6.0
      %v2659 = vmin.f32 %v2627, 6.0
      %v2660 = vmin.f32 %v2628, 6.0
      %v2661 = vmin.f32 %v2629, 6.0
      %v2662 = vmin.f32 %v2630, 6.0
      %v2663 = vmin.f32 %v2631, 6.0
      %v2664 = vmin.f32 %v2632, 6.0
      %v2665 = vmin.f32 %v2633, 6.0
      %v2666 = vmin.f32 %v2634, 6.0
      %v2667 = vmin.f32 %v2635, 6.0
      %v2668 = vmin.f32 %v2636, 6.0
      %v2669 = vpack.c.bf16 %v2638, %v2637
      %v2670 = vpack.c.bf16 %v2640, %v2639
      %v2671 = vpack.c.bf16 %v2642, %v2641
      %v2672 = vpack.c.bf16 %v2644, %v2643
      %v2673 = vpack.c.bf16 %v2646, %v2645
      %v2674 = vpack.c.bf16 %v2648, %v2647
      %v2675 = vpack.c.bf16 %v2650, %v2649
      %v2676 = vpack.c.bf16 %v2652, %v2651
      %v2677 = vpack.c.bf16 %v2654, %v2653
      %v2678 = vpack.c.bf16 %v2656, %v2655
      %v2679 = vpack.c.bf16 %v2658, %v2657
      %v2680 = vpack.c.bf16 %v2660, %v2659
      %v2681 = vpack.c.bf16 %v2662, %v2661
      %v2682 = vpack.c.bf16 %v2664, %v2663
      %v2683 = vpack.c.bf16 %v2666, %v2665
      %v2684 = vpack.c.bf16 %v2668, %v2667
      %v2685 = vld [vmem:[%s7] sm:$0xf]
      %v2686 = vld [vmem:[%s7 + $0x4] sm:$0xf]
      %v2687 = vld [vmem:[%s7 + $0x8] sm:$0xf]
      %v2688 = vld [vmem:[%s7 + $0xc] sm:$0xf]
      %v2689 = vld [vmem:[%s7 + $0x10] sm:$0xf]
      %v2690 = vld [vmem:[%s7 + $0x14] sm:$0xf]
      %v2691 = vld [vmem:[%s7 + $0x18] sm:$0xf]
      %v2692 = vld [vmem:[%s7 + $0x1c] sm:$0xf]
      %v2693 = vld [vmem:[%s7 + $0x20] sm:$0xf]
      %v2694 = vld [vmem:[%s7 + $0x24] sm:$0xf]
      %v2695 = vld [vmem:[%s7 + $0x28] sm:$0xf]
      %v2696 = vld [vmem:[%s7 + $0x2c] sm:$0xf]
      %v2697 = vld [vmem:[%s7 + $0x30] sm:$0xf]
      %v2698 = vld [vmem:[%s7 + $0x34] sm:$0xf]
      %v2699 = vld [vmem:[%s7 + $0x38] sm:$0xf]
      %v2700 = vld [vmem:[%s7 + $0x3c] sm:$0xf]
      %v2717 = vunpack.c.l.b16 %v2685
      %v2718 = vunpack.c.l.b16 %v2686
      %v2719 = vunpack.c.l.b16 %v2687
      %v2720 = vunpack.c.l.b16 %v2688
      %v2721 = vunpack.c.l.b16 %v2689
      %v2722 = vunpack.c.l.b16 %v2690
      %v2723 = vunpack.c.l.b16 %v2691
      %v2724 = vunpack.c.l.b16 %v2692
      %v2725 = vunpack.c.l.b16 %v2693
      %v2726 = vunpack.c.l.b16 %v2694
      %v2727 = vunpack.c.l.b16 %v2695
      %v2728 = vunpack.c.l.b16 %v2696
      %v2729 = vunpack.c.l.b16 %v2697
      %v2730 = vunpack.c.l.b16 %v2698
      %v2731 = vunpack.c.l.b16 %v2699
      %v2732 = vunpack.c.l.b16 %v2700
      %v2733 = vpack.c.b16 %v2718, %v2717
      %v2734 = vpack.c.b16 %v2720, %v2719
      %v2735 = vpack.c.b16 %v2722, %v2721
      %v2736 = vpack.c.b16 %v2724, %v2723
      %v2737 = vpack.c.b16 %v2726, %v2725
      %v2738 = vpack.c.b16 %v2728, %v2727
      %v2739 = vpack.c.b16 %v2730, %v2729
      %v2740 = vpack.c.b16 %v2732, %v2731
      %2749 = vxpose.xlu0.c.b16.start [1/8] %v2733, 128
      %2750 = vxpose.xlu0.c.b16.cont [2/8] %v2734, 128
      %2751 = vxpose.xlu0.c.b16.cont [3/8] %v2735, 128
      %2752 = vxpose.xlu0.c.b16.cont [4/8] %v2736, 128
      %2753 = vxpose.xlu0.c.b16.cont [5/8] %v2737, 128
      %2754 = vxpose.xlu0.c.b16.cont [6/8] %v2738, 128
      %2755 = vxpose.xlu0.c.b16.cont [7/8] %v2739, 128
      %2756 = vxpose.xlu0.c.b16.end [8/8] %v2740, 128
      %v2757 = vpop.trf.xlu0
      %v2758 = vpop.trf.xlu0
      %v2759 = vpop.trf.xlu0
      %v2760 = vpop.trf.xlu0
      %v2761 = vpop.trf.xlu0
      %v2762 = vpop.trf.xlu0
      %v2763 = vpop.trf.xlu0
      %v2764 = vpop.trf.xlu0
      %2765 = vmatprep.subr.bf16.mxu0 0
      %2766 = vmatpush1.bf16.xpose.msra.mxu0 %v2676
      %2767 = vmatprep.subr.bf16.mxu0 0
      %2768 = vmatpush1.bf16.xpose.msra.mxu0 %v2675
      %2769 = vmatprep.subr.bf16.mxu0 0
      %2770 = vmatpush1.bf16.xpose.msra.mxu0 %v2674
      %2771 = vmatprep.subr.bf16.mxu0 0
      %2772 = vmatpush1.bf16.xpose.msra.mxu0 %v2673
      %2773 = vmatprep.subr.bf16.mxu0 0
      %2774 = vmatpush1.bf16.xpose.msra.mxu0 %v2672
      %2775 = vmatprep.subr.bf16.mxu0 0
      %2776 = vmatpush1.bf16.xpose.msra.mxu0 %v2671
      %2777 = vmatprep.subr.bf16.mxu0 0
      %2778 = vmatpush1.bf16.xpose.msra.mxu0 %v2670
      %2779 = vmatprep.subr.bf16.mxu0 0
      %2780 = vmatpush1.bf16.xpose.msra.mxu0 %v2669
      %2781 = vmatprep.subr.bf16.mxu0 0
      %2782 = vmatpush2.bf16.xpose.msra.mxu0 %v2684
      %2783 = vmatprep.subr.bf16.mxu0 0
      %2784 = vmatpush2.bf16.xpose.msra.mxu0 %v2683
      %2785 = vmatprep.subr.bf16.mxu0 0
      %2786 = vmatpush2.bf16.xpose.msra.mxu0 %v2682
      %2787 = vmatprep.subr.bf16.mxu0 0
      %2788 = vmatpush2.bf16.xpose.msra.mxu0 %v2681
      %2789 = vmatprep.subr.bf16.mxu0 0
      %2790 = vmatpush2.bf16.xpose.msra.mxu0 %v2680
      %2791 = vmatprep.subr.bf16.mxu0 0
      %2792 = vmatpush2.bf16.xpose.msra.mxu0 %v2679
      %2793 = vmatprep.subr.bf16.mxu0 0
      %2794 = vmatpush2.bf16.xpose.msra.mxu0 %v2678
      %2795 = vmatprep.subr.bf16.mxu0 0
      %2796 = vmatpush2.bf16.xpose.msra.mxu0 %v2677
      %2797 = vmatprep.mubr.bf16.mxu0 0
      %2798 = vmatmul.mubr.bf16.gmra.mxu0 %v2757
      %v2799 = vpop.f32.mrf.mxu0
      %v2800 = vadd.f32 0.0, %v2799
      %v2801 = vpop.f32.mrf.mxu0
      %v2802 = vadd.f32 0.0, %v2801
      %v2803 = vpop.f32.mrf.mxu0
      %v2804 = vpop.f32.mrf.mxu0
      %2805 = vdwg.mxu0
      %v2806 = vld [vmem:[%s8] sm:$0xff]
      %2808 = vset.pattern.permute.xlu0 0
      %2809 = vperm.xlu0 %2808, %v2806
      %v2810 = vpop.permute.xlu0 %2809
      %v2812 = vmul.f32 %v2800, %v2810
      %v2813 = vmul.f32 %v2802, %v2810
      %v2814 = vld [vmem:[%s9] sm:$0xff]
      %2816 = vset.pattern.permute.xlu0 0
      %2817 = vperm.xlu0 %2816, %v2814
      %v2818 = vpop.permute.xlu0 %2817
      %v2820 = vadd.f32 %v2812, %v2818
      %v2821 = vadd.f32 %v2813, %v2818
      %v2822 = vadd.f32 %v2820, %v361
      %v2823 = vadd.f32 %v2821, %v363
      %v2826 = vcombine.low %v2822, %v2823
      %2828 = vst [vmem:[%s359] sm:$0xff] %v2826
      %p2829 = scmp.lt.s32.totalorder %s21, 1
      %s2830 = scalar_select %p2829, %s21, 1
      %s2831 = smul.addr %s2830, 2
      %s2832 = smul.addr %s2831, 4
      %s2833 = scalar_lea.vmem %s10, %s2832
      // Predicated region
      $region61: #{inverted_residual.1} parent=59 // pred_check
        %p2834 = pneg %p254
      $region62: #{inverted_residual.1} parent=59 // pred_check_branch
        %2836 = sbr.rel (%p2834) target = $region64
      $region63: #{inverted_residual.1} parent=59 // pred_region
        _
      $region64: #{inverted_residual.1} parent=59 // pred_fallthru
        _
    $region60: #{inverted_residual.1} parent=5 // pred_fallthru
      _
    %p2837 = scmp.le.s32.totalorder 2, %s16
    // Predicated region
    $region65: #{inverted_residual.1} parent=5 // pred_check
      %p2838 = pneg %p2837
    $region66: #{inverted_residual.1} parent=5 // pred_check_branch
      %2840 = sbr.rel (%p2838) target = $region68
    $region67: #{inverted_residual.1} parent=5 // pred_region
      %s2841 = ssub.s32 %s16, 2
      // Predicated region
      $region69: #{inverted_residual.1} parent=67 // pred_check
        %p2842 = pneg %p260
      $region70: #{inverted_residual.1} parent=67 // pred_check_branch
        %2844 = sbr.rel (%p2842) target = $region72
      $region71: #{inverted_residual.1} parent=67 // pred_region
        %p2845 = scmp.lt.s32.totalorder %s22, 1
        %s2846 = scalar_select %p2845, %s22, 1
        %s2847 = smul.addr %s2846, 2
        %s2848 = smul.addr %s2847, 4
        %s2849 = scalar_lea.vmem %s10, %s2848
      $region72: #{inverted_residual.1} parent=67 // pred_fallthru
        _
    $region68: #{inverted_residual.1} parent=5 // pred_fallthru
      _
  $region6: #{inverted_residual.1} parent=0 // loop_footer
    %s20 = sadd.s32 1, %s16
  $region7: #{inverted_residual.1} parent=0 // loop_footer_branch
    %15 = sbr.rel target = $region3
  $region8: #{inverted_residual.1} parent=0 // loop_exit
    _

</llo_original>
